<compile_context>
chip_gen: v7x
topology: tpu7x:2x2x1
jax: 0.10.0
libtpu: 0.0.40
codegen_flags: <defaults>
</compile_context>

<pallas_src>
import math
import functools

import jax
import jax.numpy as jnp
from jax import lax
from jax.scipy.special import logsumexp
from jax.experimental import pallas as pl
from jax.experimental.pallas import tpu as pltpu


# MXU / HBM-facing operands are stored in bf16 (accumulation is always f32, and
# tanh / bias / reductions run in f32 so v5e's f32-only VPU/EUP is unaffected).
# Set to jnp.float32 for strict f32 parity.
MXU_INPUT_DTYPE = jnp.bfloat16


def _vmem_limit_bytes():
    """Generation-aware scoped-VMEM limit (v7x has only 64 MiB physical VMEM)."""
    try:
        cap = int(pltpu.get_tpu_info().vmem_capacity_bytes)
    except Exception:
        cap = 64 * 1024 * 1024
    return int(min(3 * cap // 4, 64 * 1024 * 1024))


# ----------------------------------------------------------------------------
# Pallas kernel 1: dense linear layer  y = x @ Wt [+ b]   (tiled over M and O)
# ----------------------------------------------------------------------------
def _linear_bias_kernel(x_ref, w_ref, b_ref, o_ref):
    acc = jnp.dot(x_ref[...], w_ref[...], preferred_element_type=jnp.float32)
    o_ref[...] = (acc + b_ref[...]).astype(o_ref.dtype)


def _linear_nobias_kernel(x_ref, w_ref, o_ref):
    o_ref[...] = jnp.dot(x_ref[...], w_ref[...],
                         preferred_element_type=jnp.float32).astype(o_ref.dtype)


def linear_pallas(x, Wt, b=None, *, block_m=512, block_o=1024):
    """x: (..., K), Wt: pre-transposed (K, O), b: (O,) or None -> (..., O)."""
    orig_shape = x.shape
    K = orig_shape[-1]
    M = int(math.prod(orig_shape[:-1]))
    O = Wt.shape[1]
    out_dtype = x.dtype

    in_dt = MXU_INPUT_DTYPE
    isz = jnp.dtype(in_dt).itemsize
    x2 = x.reshape(M, K).astype(in_dt)
    w2 = Wt.astype(in_dt)

    # Full-dim blocks when small (always legal), 128-aligned tiles when large.
    tm = M if M <= block_m else block_m
    to = O if O <= block_o else block_o

    vmem_limit = _vmem_limit_bytes()
    budget = (3 * vmem_limit) // 4

    def cost(tm_, to_):
        return (2 * (tm_ * K + K * to_) * isz
                + 2 * tm_ * to_ * jnp.dtype(out_dtype).itemsize + 2 * to_ * 4)

    # Shrink 128-aligned tiles until the double-buffered operands fit scoped VMEM
    # (matters on v5e's small scoped default / v7x's 64 MiB at large K).
    while to > 128 and to % 256 == 0 and cost(tm, to) > budget:
        to //= 2
    while tm > 128 and tm % 256 == 0 and cost(tm, to) > budget:
        tm //= 2
    # TODO(synk): add a K grid axis + f32 VMEM accumulator for very large K.

    gm, go = pl.cdiv(M, tm), pl.cdiv(O, to)
    # Grid ordering: the innermost grid axis decides which operand re-streams from
    # HBM for every block of the outer axis.  Pick the cheaper re-stream.
    restream_w = gm * K * O      # W re-fetched once per i block (j innermost)
    restream_x = go * M * K      # x re-fetched once per j block (i innermost)
    if restream_w <= restream_x:
        grid = (gm, go)
        xm = lambda i, j: (i, 0)
        wm = lambda i, j: (0, j)
        bm = lambda i, j: (0, j)
        om = lambda i, j: (i, j)
    else:
        grid = (go, gm)
        xm = lambda j, i: (i, 0)
        wm = lambda j, i: (0, j)
        bm = lambda j, i: (0, j)
        om = lambda j, i: (i, j)

    cparams = pltpu.CompilerParams(
        dimension_semantics=("parallel", "parallel"),
        vmem_limit_bytes=vmem_limit)

    if b is None:
        out = pl.pallas_call(
            _linear_nobias_kernel,
            out_shape=jax.ShapeDtypeStruct((M, O), out_dtype),
            grid=grid,
            in_specs=[pl.BlockSpec((tm, K), xm),
                      pl.BlockSpec((K, to), wm)],
            out_specs=pl.BlockSpec((tm, to), om),
            compiler_params=cparams,
        )(x2, w2)
    else:
        bb = b.reshape(1, O).astype(jnp.float32)
        out = pl.pallas_call(
            _linear_bias_kernel,
            out_shape=jax.ShapeDtypeStruct((M, O), out_dtype),
            grid=grid,
            in_specs=[pl.BlockSpec((tm, K), xm),
                      pl.BlockSpec((K, to), wm),
                      pl.BlockSpec((1, to), bm)],
            out_specs=pl.BlockSpec((tm, to), om),
            compiler_params=cparams,
        )(x2, w2, bb)
    return out.reshape(*orig_shape[:-1], O)


def linear_xla(x, Wt, b=None):
    """Plain-XLA fallback for tiny / lane-sparse matmuls (O=1, num_classes, B*S rows)."""
    y = jnp.matmul(x, Wt)
    return y if b is None else y + b


# ----------------------------------------------------------------------------
# Pallas kernel 2: fused 4-head biaffine span metric (projections fused in),
# tiled over N, D reduction chunked.
#   logits[h, b, i, j] = sum_d w3[h, d] * tanh( (hid @ W1_h + b1_h)[b, i, d]
#                                             + (enc @ W2_h + b2_h)[b, j, d] )
# ----------------------------------------------------------------------------
def _span_kernel(hidden_ref, enc_ref, w1_ref, b1_ref, w2_ref, b2_ref, w3_ref,
                 o_ref, a_ref, e_ref, *, dc):
    # Hidden-side projection A: constant over the innermost N axis -> compute once
    # per (head, batch) into the persistent VMEM scratch.
    @pl.when(pl.program_id(2) == 0)
    def _():
        a_ref[...] = (jnp.dot(hidden_ref[...], w1_ref[...],
                              preferred_element_type=jnp.float32)
                      + b1_ref[...])

    # Encoder-side projection E for this N tile (MXU, f32 accumulate).
    e_ref[...] = (jnp.dot(enc_ref[...], w2_ref[...],
                          preferred_element_type=jnp.float32)
                  + b2_ref[...])

    S, D = a_ref.shape
    TN = e_ref.shape[0]
    n_chunks = D // dc

    def contrib(d0):
        a_c = a_ref[:, pl.ds(d0, dc)]                         # (S, dc)
        e_c = e_ref[:, pl.ds(d0, dc)]                         # (TN, dc)
        w_c = w3_ref[:, pl.ds(d0, dc)]                        # (1, dc)
        t = jnp.tanh(a_c[:, None, :] + e_c[None, :, :])       # (S, TN, dc) bounded
        return jnp.sum(t * w_c[None, :, :], axis=-1)          # (S, TN)

    if n_chunks <= 1:
        o_ref[...] = contrib(0).astype(o_ref.dtype)
    else:
        acc = lax.fori_loop(
            0, n_chunks,
            lambda c, acc: acc + contrib(pl.multiple_of(c * dc, dc)),
            jnp.zeros((S, TN), jnp.float32),
            unroll=True)
        o_ref[...] = acc.astype(o_ref.dtype)


def _pick_dc(D):
    """D-reduction chunk width (keeps the tanh intermediate at (S, TN, dc))."""
    if D <= 128:
        return D
    if D % 128 == 0:
        return 128
    # TODO(synk): irregular D (not a multiple of 128) falls back to a single slab.
    return D


def _pick_span_tile_n(S, N, D, dc, in_isz, budget):
    """Largest lane-dense N tile whose VMEM footprint fits `budget` (counts
    double-buffered enc/out tiles, A/E scratch, chunked tanh intermediates and
    the W1/W2 weight tiles — not just the tanh tensor)."""
    def est(tn):
        return (2 * tn * D * in_isz          # enc input tile, double-buffered
                + tn * D * 4                 # E scratch (f32)
                + S * D * 4                  # A scratch (f32)
                + 2 * S * tn * 4             # output tile, double-buffered
                + 2 * S * tn * dc * 4        # tanh chunk + weighted product
                + S * tn * 4                 # accumulator
                + 4 * D * D * in_isz         # W1 / W2 tiles (double-buffered)
                + 2 * S * D * in_isz         # hidden tile
                + 8 * D * 4)                 # b1 / b2 / w3
    if N < 128 or est(N) <= budget:
        return N
    tn = min(2048, (N // 128) * 128)
    while tn > 128 and est(tn) > budget:
        tn -= 128
    return tn


def biaffine_span_pallas(hidden, enc, W1, b1, W2, b2, W3, *, tile_n=None):
    """hidden (B,S,D), enc (B,N,D); W1/W2 (4,D,D) pre-transposed per head,
    b1/b2 (4,1,D), W3 (4,1,D) -> (4,B,S,N) f32.  Head order: hs, he, ts, te."""
    B, S, D = hidden.shape
    _, N, _ = enc.shape
    in_dt = MXU_INPUT_DTYPE
    isz = jnp.dtype(in_dt).itemsize

    dc = _pick_dc(D)
    vmem_limit = _vmem_limit_bytes()
    if tile_n is None:
        tile_n = _pick_span_tile_n(S, N, D, dc, isz, budget=(3 * vmem_limit) // 4)
    grid = (4, B, pl.cdiv(N, tile_n))

    flops = int(2 * 4 * B * N * D * D          # E projections (per head)
                + 2 * 4 * B * S * D * D        # A projections (per head, batch)
                + 3 * 4 * B * S * N * D)       # add + mul + reduce
    transcendentals = int(4 * B * S * N * D)
    bytes_accessed = int((4 * B * N * D + B * S * D + 8 * D * D + 12 * D) * isz
                         + 4 * B * S * N * 4)

    return pl.pallas_call(
        functools.partial(_span_kernel, dc=dc),
        out_shape=jax.ShapeDtypeStruct((4, B, S, N), jnp.float32),
        grid=grid,
        in_specs=[
            pl.BlockSpec((None, S, D), lambda h, b, n: (b, 0, 0)),       # hidden
            pl.BlockSpec((None, tile_n, D), lambda h, b, n: (b, n, 0)),  # enc tile
            pl.BlockSpec((None, D, D), lambda h, b, n: (h, 0, 0)),       # W1[h]
            pl.BlockSpec((None, 1, D), lambda h, b, n: (h, 0, 0)),       # b1[h]
            pl.BlockSpec((None, D, D), lambda h, b, n: (h, 0, 0)),       # W2[h]
            pl.BlockSpec((None, 1, D), lambda h, b, n: (h, 0, 0)),       # b2[h]
            pl.BlockSpec((None, 1, D), lambda h, b, n: (h, 0, 0)),       # w3[h]
        ],
        out_specs=pl.BlockSpec((None, None, S, tile_n),
                               lambda h, b, n: (h, b, 0, n)),
        scratch_shapes=[pltpu.VMEM((S, D), jnp.float32),        # A scratch
                        pltpu.VMEM((tile_n, D), jnp.float32)],  # E scratch
        compiler_params=pltpu.CompilerParams(
            dimension_semantics=("parallel", "parallel", "arbitrary"),
            vmem_limit_bytes=vmem_limit),
        cost_estimate=pl.CostEstimate(flops=flops,
                                      transcendentals=transcendentals,
                                      bytes_accessed=bytes_accessed),
    )(hidden.astype(in_dt), enc.astype(in_dt),
      W1.astype(in_dt), b1.astype(jnp.float32),
      W2.astype(in_dt), b2.astype(jnp.float32),
      W3.astype(jnp.float32))


# ----------------------------------------------------------------------------
# Plain-JAX glue (layernorm, sinkhorn, entropy minimization, GRU cell, etc.)
# ----------------------------------------------------------------------------
def layernorm(x, g, b, eps=1e-5):
    m = jnp.mean(x, axis=-1, keepdims=True)
    v = jnp.var(x, axis=-1, keepdims=True)
    return (x - m) / jnp.sqrt(v + eps) * g + b


def sinkhorn(C, a, b, u, v, n_sh_iters=5):
    p = -C
    log_a = jnp.log(jnp.maximum(a, 1e-30))
    log_b = jnp.log(jnp.maximum(b, 1e-30))
    if u is None:
        u = jnp.zeros_like(a)
    if v is None:
        v = jnp.zeros_like(b)
    for _ in range(n_sh_iters):
        u = log_a - logsumexp(p + v[:, None, :], axis=2)
        v = log_b - logsumexp(p + u[:, :, None], axis=1)
    logT = p + u[:, :, None] + v[:, None, :]
    return jnp.exp(logT), u, v


def minimize_entropy_of_sinkhorn(C_0, a, b, noise, mesh_lr=1.0, n_mesh_iters=4):
    # torch.autograd.grad over sinkhorn -> jax.value_and_grad (plain JAX, not Pallas).
    C_t = C_0 + 0.001 * noise
    u = None
    v = None
    for _ in range(n_mesh_iters):
        def ent_fn(C, u_in, v_in):
            attn, u_out, v_out = sinkhorn(C, a, b, u_in, v_in)
            x = jnp.clip(attn, 1e-20, 1.0)
            ent = jnp.sum(jnp.mean(-x * jnp.log(x), axis=(1, 2)))
            return ent, (u_out, v_out)

        u_in = None if u is None else jax.lax.stop_gradient(u)
        v_in = None if v is None else jax.lax.stop_gradient(v)
        (_, (u, v)), grad = jax.value_and_grad(ent_fn, has_aux=True)(C_t, u_in, v_in)
        g = grad + 1e-20
        norm = jnp.sqrt(jnp.sum(g * g, axis=(1, 2), keepdims=True))
        g = g / jnp.maximum(norm, 1e-12)            # F.normalize over dims [1,2]
        C_t = C_t - mesh_lr * g
    return C_t, u, v


def cosine_distance(k, q):
    # TODO(synk): cosine_distance was not defined in the reference module;
    # using 1 - cosine-similarity, k (B,N,D) x q (B,S,D) -> (B,N,S).
    k_n = k / (jnp.linalg.norm(k, axis=-1, keepdims=True) + 1e-8)
    q_n = q / (jnp.linalg.norm(q, axis=-1, keepdims=True) + 1e-8)
    return 1.0 - jnp.einsum('bnd,bsd->bns', k_n, q_n)


def gru_cell(x, h, p):
    # slot-side tiny matmuls (M = B*S rows): keep in XLA, Pallas launch cost dominates.
    gi = linear_xla(x, p['gru_WihT'], p['gru_bih'])
    gh = linear_xla(h, p['gru_WhhT'], p['gru_bhh'])
    i_r, i_z, i_n = jnp.split(gi, 3, axis=-1)
    h_r, h_z, h_n = jnp.split(gh, 3, axis=-1)
    r = jax.nn.sigmoid(i_r + h_r)
    z = jax.nn.sigmoid(i_z + h_z)
    n = jnp.tanh(i_n + r * h_n)
    return (1.0 - z) * n + z * h


def marginal_mlp_encoder(x, W1T, b1, W2T):
    # first layer is encoder-side (M = B*N) and lane-dense -> Pallas;
    # second layer has O=1 (lane-sparse masked stores) -> XLA.
    h = jax.nn.gelu(linear_pallas(x, W1T, b1), approximate=False)
    return linear_xla(h, W2T)


def marginal_mlp_slots(x, W1T, b1, W2T):
    h = jax.nn.gelu(linear_xla(x, W1T, b1), approximate=False)
    return linear_xla(h, W2T)


def slot_mlp(x, p):
    h = jax.nn.gelu(linear_xla(x, p['mlp_W1T'], p['mlp_b1']), approximate=False)
    return linear_xla(h, p['mlp_W2T'], p['mlp_b2'])


def slot_attention_forward(p, inputs, key, num_iterations, num_slots, mesh_lr, n_mesh_iters):
    B, N, D = inputs.shape
    x = layernorm(inputs, p['ln_in_g'], p['ln_in_b'])
    k = linear_pallas(x, p['WkT'])          # encoder-side, no bias: Pallas
    v = linear_pallas(x, p['WvT'])

    k1, k2 = jax.random.split(key)
    slots_init = jax.random.normal(k1, (B, num_slots, D), inputs.dtype)
    slots = p['slots_mu'] + jnp.exp(p['slots_log_sigma']) * slots_init

    a = num_slots * jax.nn.softmax(
        marginal_mlp_encoder(x, p['im_W1T'], p['im_b1'], p['im_W2T']).squeeze(-1), axis=1)
    noise = jax.random.normal(k2, (B, N, num_slots), inputs.dtype)

    for _ in range(num_iterations):
        slots_prev = slots
        slots_n = layernorm(slots, p['ln_slot_g'], p['ln_slot_b'])
        b = num_slots * jax.nn.softmax(
            marginal_mlp_slots(slots_n, p['sm_W1T'], p['sm_b1'], p['sm_W2T']).squeeze(-1), axis=1)
        q = linear_xla(slots_n, p['WqT'])   # slot-side: XLA
        cost = num_slots * cosine_distance(k, q)
        cost, sh_u, sh_v = minimize_entropy_of_sinkhorn(
            cost, a, b, noise, mesh_lr=mesh_lr, n_mesh_iters=n_mesh_iters)
        attn, _, _ = sinkhorn(cost, a, b, sh_u, sh_v)
        updates = jnp.einsum('bns,bnd->bsd', attn, v)            # attn^T @ v
        slots = gru_cell(updates.reshape(B * num_slots, D),
                         slots_prev.reshape(B * num_slots, D), p)
        slots = slots.reshape(B, num_slots, D)
        slots = slots + slot_mlp(layernorm(slots, p['ln_mlp_g'], p['ln_mlp_b']), p)
    return slots


def set_decoder_forward(p, enc_hidden, enc_mask, key, *,
                        num_iterations, num_slots, mesh_lr, n_mesh_iters,
                        span_tile_n=None):
    del enc_mask  # unused by the reference forward
    hidden = slot_attention_forward(p, enc_hidden, key,
                                    num_iterations, num_slots, mesh_lr, n_mesh_iters)

    # classifier output is num_classes-wide (lane-sparse) and tiny -> XLA
    class_logits = linear_xla(hidden, p['cls_WT'], p['cls_b'])

    # fused biaffine span metric: 4 heads + both projections in one pallas_call
    # (no eproj HBM round-trip / transpose).
    span = biaffine_span_pallas(hidden, enc_hidden,
                                p['span_W1T'], p['span_b1'],
                                p['span_W2T'], p['span_b2'],
                                p['span_W3'], tile_n=span_tile_n)
    return class_logits, span[0], span[1], span[2], span[3]


# ----------------------------------------------------------------------------
# Deterministic parameter init (synthetic; shapes follow the PyTorch __init__,
# weights stored pre-transposed as (K, O); biaffine heads stacked as (4, D, D))
# ----------------------------------------------------------------------------
def init_params(key, D, num_classes):
    H = 2 * D
    keys = iter(jax.random.split(key, 64))

    def w(shape, scale=0.1):
        return (jax.random.normal(next(keys), shape) * scale).astype(jnp.float32)

    z = lambda *s: jnp.zeros(s, jnp.float32)
    o = lambda *s: jnp.ones(s, jnp.float32)

    p = dict(
        ln_in_g=o(D), ln_in_b=z(D),
        ln_slot_g=o(D), ln_slot_b=z(D),
        ln_mlp_g=o(D), ln_mlp_b=z(D),
        WqT=w((D, D)), WkT=w((D, D)), WvT=w((D, D)),
        gru_WihT=w((D, 3 * D)), gru_WhhT=w((D, 3 * D)),
        gru_bih=z(3 * D), gru_bhh=z(3 * D),
        mlp_W1T=w((D, H)), mlp_b1=z(H),
        mlp_W2T=w((H, D)), mlp_b2=z(D),
        slots_mu=w((1, 1, D)), slots_log_sigma=w((1, 1, D)),
        sm_W1T=w((D, H)), sm_b1=z(H), sm_W2T=w((H, 1)),
        im_W1T=w((D, H)), im_b1=z(H), im_W2T=w((H, 1)),
        cls_WT=w((D, num_classes)), cls_b=z(num_classes),
        # fused biaffine heads, order: hs, he, ts, te
        span_W1T=w((4, D, D)), span_b1=w((4, 1, D), 0.02),
        span_W2T=w((4, D, D)), span_b2=w((4, 1, D), 0.02),
        span_W3=w((4, 1, D)),
    )
    return p


if __name__ == "__main__":
    def run(B, N, D, S, num_classes, num_iterations, n_mesh_iters, span_tile_n):
        root = jax.random.PRNGKey(0)
        k_param, k_data, k_fwd = jax.random.split(root, 3)
        params = init_params(k_param, D, num_classes)
        enc_hidden = jax.random.normal(k_data, (B, N, D), jnp.float32)
        enc_mask = jnp.ones((B, N), jnp.float32)

        fwd = jax.jit(functools.partial(
            set_decoder_forward,
            num_iterations=num_iterations, num_slots=S,
            mesh_lr=1.0, n_mesh_iters=n_mesh_iters, span_tile_n=span_tile_n))
        outs = jax.block_until_ready(fwd(params, enc_hidden, enc_mask, k_fwd))

        class_logits, hs, he, ts, te = outs
        assert class_logits.shape == (B, S, num_classes)
        assert hs.shape == he.shape == ts.shape == te.shape == (B, S, N)
        assert all(bool(jnp.all(jnp.isfinite(x))) for x in outs)

    # Small config (single N tile, single D chunk).
    run(B=2, N=16, D=32, S=8, num_classes=5,
        num_iterations=2, n_mesh_iters=4, span_tile_n=None)
    # 128-aligned config exercising the D-chunked reduce and the multi-tile
    # N axis (A-scratch reuse across the 'arbitrary' grid axis).
    run(B=2, N=256, D=256, S=8, num_classes=5,
        num_iterations=1, n_mesh_iters=2, span_tile_n=128)

    print("KERNEL_OK")
</pallas_src>

<mosaic_0001>
module attributes {stable_mosaic.version = 11 : i64} {
  func.func @_linear_nobias_kernel(%arg0: i32, %arg1: i32, %arg2: memref<32x32xbf16, #tpu.memory_space<vmem>>, %arg3: memref<32x32xbf16, #tpu.memory_space<vmem>>, %arg4: memref<32x32xf32, #tpu.memory_space<vmem>>) attributes {dimension_semantics = [#tpu.dimension_semantics<parallel>, #tpu.dimension_semantics<parallel>], iteration_bounds = array<i64: 1, 1>, scalar_prefetch = 0 : i64, scratch_operands = 0 : i64, tpu.core_type = #tpu.core_type<tc>, window_params = [{transform_indices = @transform_0, window_bounds = array<i64: 32, 32>}, {transform_indices = @transform_1, window_bounds = array<i64: 32, 32>}, {transform_indices = @transform_2, window_bounds = array<i64: 32, 32>}]} {
    %c0 = arith.constant 0 : index
    %c0_0 = arith.constant 0 : index
    %0 = vector.load %arg2[%c0, %c0_0] : memref<32x32xbf16, #tpu.memory_space<vmem>>, vector<32x32xbf16>
    %c0_1 = arith.constant 0 : index
    %c0_2 = arith.constant 0 : index
    %1 = vector.load %arg3[%c0_1, %c0_2] : memref<32x32xbf16, #tpu.memory_space<vmem>>, vector<32x32xbf16>
    %cst = arith.constant dense<0.000000e+00> : vector<32x32xf32>
    %2 = tpu.matmul %0, %1, %cst {dimension_numbers = #tpu.dot_dimension_numbers<[1], [0], [0], [1], [0, 0, 1, 1], [], []>} : vector<32x32xbf16>, vector<32x32xbf16>, vector<32x32xf32> -> vector<32x32xf32>
    %c0_3 = arith.constant 0 : index
    %c0_4 = arith.constant 0 : index
    %3 = vector.load %arg4[%c0_3, %c0_4] : memref<32x32xf32, #tpu.memory_space<vmem>>, vector<32x32xf32>
    tpu.vector_store %arg4[%c0_3, %c0_4], %2 {strides = array<i32>} : memref<32x32xf32, #tpu.memory_space<vmem>>, vector<32x32xf32>,
    return
  }
  func.func @transform_0(%arg0: i32, %arg1: i32) -> (i32, i32) {
    %c0_i32 = arith.constant 0 : i32
    %c0_i32_0 = arith.constant 0 : i32
    return %arg0, %c0_i32 : i32, i32
  }
  func.func @transform_1(%arg0: i32, %arg1: i32) -> (i32, i32) {
    %c0_i32 = arith.constant 0 : i32
    %c0_i32_0 = arith.constant 0 : i32
    return %c0_i32, %arg1 : i32, i32
  }
  func.func @transform_2(%arg0: i32, %arg1: i32) -> (i32, i32) {
    %c0_i32 = arith.constant 0 : i32
    return %arg0, %arg1 : i32, i32
  }
}

module attributes {stable_mosaic.version = 11 : i64} {
  func.func @_linear_bias_kernel(%arg0: i32, %arg1: i32, %arg2: memref<32x32xbf16, #tpu.memory_space<vmem>>, %arg3: memref<32x64xbf16, #tpu.memory_space<vmem>>, %arg4: memref<1x64xf32, #tpu.memory_space<vmem>>, %arg5: memref<32x64xf32, #tpu.memory_space<vmem>>) attributes {dimension_semantics = [#tpu.dimension_semantics<parallel>, #tpu.dimension_semantics<parallel>], iteration_bounds = array<i64: 1, 1>, scalar_prefetch = 0 : i64, scratch_operands = 0 : i64, tpu.core_type = #tpu.core_type<tc>, window_params = [{transform_indices = @transform_0, window_bounds = array<i64: 32, 32>}, {transform_indices = @transform_1, window_bounds = array<i64: 32, 64>}, {transform_indices = @transform_2, window_bounds = array<i64: 1, 64>}, {transform_indices = @transform_3, window_bounds = array<i64: 32, 64>}]} {
    %c0 = arith.constant 0 : index
    %c0_0 = arith.constant 0 : index
    %0 = vector.load %arg2[%c0, %c0_0] : memref<32x32xbf16, #tpu.memory_space<vmem>>, vector<32x32xbf16>
    %c0_1 = arith.constant 0 : index
    %c0_2 = arith.constant 0 : index
    %1 = vector.load %arg3[%c0_1, %c0_2] : memref<32x64xbf16, #tpu.memory_space<vmem>>, vector<32x64xbf16>
    %cst = arith.constant dense<0.000000e+00> : vector<32x64xf32>
    %2 = tpu.matmul %0, %1, %cst {dimension_numbers = #tpu.dot_dimension_numbers<[1], [0], [0], [1], [0, 0, 1, 1], [], []>} : vector<32x32xbf16>, vector<32x64xbf16>, vector<32x64xf32> -> vector<32x64xf32>
    %c0_3 = arith.constant 0 : index
    %c0_4 = arith.constant 0 : index
    %3 = vector.load %arg4[%c0_3, %c0_4] : memref<1x64xf32, #tpu.memory_space<vmem>>, vector<1x64xf32>
    %4 = vector.broadcast %3 : vector<1x64xf32> to vector<32x64xf32>
    %5 = arith.addf %2, %4 : vector<32x64xf32>
    %c0_5 = arith.constant 0 : index
    %c0_6 = arith.constant 0 : index
    %6 = vector.load %arg5[%c0_5, %c0_6] : memref<32x64xf32, #tpu.memory_space<vmem>>, vector<32x64xf32>
    tpu.vector_store %arg5[%c0_5, %c0_6], %5 {strides = array<i32>} : memref<32x64xf32, #tpu.memory_space<vmem>>, vector<32x64xf32>,
    return
  }
  func.func @transform_0(%arg0: i32, %arg1: i32) -> (i32, i32) {
    %c0_i32 = arith.constant 0 : i32
    %c0_i32_0 = arith.constant 0 : i32
    return %arg1, %c0_i32 : i32, i32
  }
  func.func @transform_1(%arg0: i32, %arg1: i32) -> (i32, i32) {
    %c0_i32 = arith.constant 0 : i32
    %c0_i32_0 = arith.constant 0 : i32
    return %c0_i32, %arg0 : i32, i32
  }
  func.func @transform_2(%arg0: i32, %arg1: i32) -> (i32, i32) {
    %c0_i32 = arith.constant 0 : i32
    %c0_i32_0 = arith.constant 0 : i32
    return %c0_i32, %arg0 : i32, i32
  }
  func.func @transform_3(%arg0: i32, %arg1: i32) -> (i32, i32) {
    %c0_i32 = arith.constant 0 : i32
    return %arg1, %arg0 : i32, i32
  }
}

module attributes {stable_mosaic.version = 11 : i64} {
  func.func @_span_kernel(%arg0: i32, %arg1: i32, %arg2: i32, %arg3: memref<1x8x32xbf16, #tpu.memory_space<vmem>>, %arg4: memref<1x16x32xbf16, #tpu.memory_space<vmem>>, %arg5: memref<1x32x32xbf16, #tpu.memory_space<vmem>>, %arg6: memref<1x1x32xf32, #tpu.memory_space<vmem>>, %arg7: memref<1x32x32xbf16, #tpu.memory_space<vmem>>, %arg8: memref<1x1x32xf32, #tpu.memory_space<vmem>>, %arg9: memref<1x1x32xf32, #tpu.memory_space<vmem>>, %arg10: memref<1x1x8x16xf32, #tpu.memory_space<vmem>>, %arg11: memref<8x32xf32, #tpu.memory_space<vmem>>, %arg12: memref<16x32xf32, #tpu.memory_space<vmem>>) attributes {dimension_semantics = [#tpu.dimension_semantics<parallel>, #tpu.dimension_semantics<parallel>, #tpu.dimension_semantics<arbitrary>], iteration_bounds = array<i64: 4, 2, 1>, scalar_prefetch = 0 : i64, scratch_operands = 2 : i64, tpu.core_type = #tpu.core_type<tc>, window_params = [{transform_indices = @transform_0, window_bounds = array<i64: 1, 8, 32>}, {transform_indices = @transform_1, window_bounds = array<i64: 1, 16, 32>}, {transform_indices = @transform_2, window_bounds = array<i64: 1, 32, 32>}, {transform_indices = @transform_3, window_bounds = array<i64: 1, 1, 32>}, {transform_indices = @transform_4, window_bounds = array<i64: 1, 32, 32>}, {transform_indices = @transform_5, window_bounds = array<i64: 1, 1, 32>}, {transform_indices = @transform_6, window_bounds = array<i64: 1, 1, 32>}, {transform_indices = @transform_7, window_bounds = array<i64: 1, 1, 8, 16>}]} {
    %c0_i32 = arith.constant 0 : i32
    %0 = arith.cmpi eq, %arg2, %c0_i32 : i32
    %1 = arith.extui %0 : i1 to i32
    %c0_i32_0 = arith.constant 0 : i32
    %2 = arith.cmpi ne, %1, %c0_i32_0 : i32
    scf.if %2 {
      %c0_23 = arith.constant 0 : index
      %c0_24 = arith.constant 0 : index
      %c0_25 = arith.constant 0 : index
      %30 = vector.load %arg3[%c0_23, %c0_24, %c0_25] : memref<1x8x32xbf16, #tpu.memory_space<vmem>>, vector<1x8x32xbf16>
      %31 = vector.shape_cast %30 : vector<1x8x32xbf16> to vector<8x32xbf16>
      %c0_26 = arith.constant 0 : index
      %c0_27 = arith.constant 0 : index
      %c0_28 = arith.constant 0 : index
      %32 = vector.load %arg5[%c0_26, %c0_27, %c0_28] : memref<1x32x32xbf16, #tpu.memory_space<vmem>>, vector<1x32x32xbf16>
      %33 = vector.shape_cast %32 : vector<1x32x32xbf16> to vector<32x32xbf16>
      %cst_29 = arith.constant dense<0.000000e+00> : vector<8x32xf32>
      %34 = tpu.matmul %31, %33, %cst_29 {dimension_numbers = #tpu.dot_dimension_numbers<[1], [0], [0], [1], [0, 0, 1, 1], [], []>} : vector<8x32xbf16>, vector<32x32xbf16>, vector<8x32xf32> -> vector<8x32xf32>
      %c0_30 = arith.constant 0 : index
      %c0_31 = arith.constant 0 : index
      %c0_32 = arith.constant 0 : index
      %35 = vector.load %arg6[%c0_30, %c0_31, %c0_32] : memref<1x1x32xf32, #tpu.memory_space<vmem>>, vector<1x1x32xf32>
      %36 = vector.shape_cast %35 : vector<1x1x32xf32> to vector<1x32xf32>
      %37 = vector.broadcast %36 : vector<1x32xf32> to vector<8x32xf32>
      %38 = arith.addf %34, %37 : vector<8x32xf32>
      %c0_33 = arith.constant 0 : index
      %c0_34 = arith.constant 0 : index
      %39 = vector.load %arg11[%c0_33, %c0_34] : memref<8x32xf32, #tpu.memory_space<vmem>>, vector<8x32xf32>
      tpu.vector_store %arg11[%c0_33, %c0_34], %38 {strides = array<i32>} : memref<8x32xf32, #tpu.memory_space<vmem>>, vector<8x32xf32>,
    } else {
    }
    %c0 = arith.constant 0 : index
    %c0_1 = arith.constant 0 : index
    %c0_2 = arith.constant 0 : index
    %3 = vector.load %arg4[%c0, %c0_1, %c0_2] : memref<1x16x32xbf16, #tpu.memory_space<vmem>>, vector<1x16x32xbf16>
    %4 = vector.shape_cast %3 : vector<1x16x32xbf16> to vector<16x32xbf16>
    %c0_3 = arith.constant 0 : index
    %c0_4 = arith.constant 0 : index
    %c0_5 = arith.constant 0 : index
    %5 = vector.load %arg7[%c0_3, %c0_4, %c0_5] : memref<1x32x32xbf16, #tpu.memory_space<vmem>>, vector<1x32x32xbf16>
    %6 = vector.shape_cast %5 : vector<1x32x32xbf16> to vector<32x32xbf16>
    %cst = arith.constant dense<0.000000e+00> : vector<16x32xf32>
    %7 = tpu.matmul %4, %6, %cst {dimension_numbers = #tpu.dot_dimension_numbers<[1], [0], [0], [1], [0, 0, 1, 1], [], []>} : vector<16x32xbf16>, vector<32x32xbf16>, vector<16x32xf32> -> vector<16x32xf32>
    %c0_6 = arith.constant 0 : index
    %c0_7 = arith.constant 0 : index
    %c0_8 = arith.constant 0 : index
    %8 = vector.load %arg8[%c0_6, %c0_7, %c0_8] : memref<1x1x32xf32, #tpu.memory_space<vmem>>, vector<1x1x32xf32>
    %9 = vector.shape_cast %8 : vector<1x1x32xf32> to vector<1x32xf32>
    %10 = vector.broadcast %9 : vector<1x32xf32> to vector<16x32xf32>
    %11 = arith.addf %7, %10 : vector<16x32xf32>
    %c0_9 = arith.constant 0 : index
    %c0_10 = arith.constant 0 : index
    %12 = vector.load %arg12[%c0_9, %c0_10] : memref<16x32xf32, #tpu.memory_space<vmem>>, vector<16x32xf32>
    tpu.vector_store %arg12[%c0_9, %c0_10], %11 {strides = array<i32>} : memref<16x32xf32, #tpu.memory_space<vmem>>, vector<16x32xf32>,
    %c0_11 = arith.constant 0 : index
    %c0_12 = arith.constant 0 : index
    %13 = vector.load %arg11[%c0_11, %c0_12] : memref<8x32xf32, #tpu.memory_space<vmem>>, vector<8x32xf32>
    %c0_13 = arith.constant 0 : index
    %c0_14 = arith.constant 0 : index
    %14 = vector.load %arg12[%c0_13, %c0_14] : memref<16x32xf32, #tpu.memory_space<vmem>>, vector<16x32xf32>
    %c0_15 = arith.constant 0 : index
    %c0_16 = arith.constant 0 : index
    %c0_17 = arith.constant 0 : index
    %15 = vector.load %arg9[%c0_15, %c0_16, %c0_17] : memref<1x1x32xf32, #tpu.memory_space<vmem>>, vector<1x1x32xf32>
    %16 = vector.shape_cast %15 : vector<1x1x32xf32> to vector<1x32xf32>
    %17 = vector.shape_cast %13 : vector<8x32xf32> to vector<8x1x32xf32>
    %18 = vector.shape_cast %14 : vector<16x32xf32> to vector<1x16x32xf32>
    %19 = vector.broadcast %17 : vector<8x1x32xf32> to vector<8x16x32xf32>
    %20 = vector.broadcast %18 : vector<1x16x32xf32> to vector<8x16x32xf32>
    %21 = arith.addf %19, %20 : vector<8x16x32xf32>
    %22 = math.tanh %21 : vector<8x16x32xf32>
    %23 = vector.shape_cast %16 : vector<1x32xf32> to vector<1x1x32xf32>
    %24 = vector.broadcast %23 : vector<1x1x32xf32> to vector<8x16x32xf32>
    %25 = arith.mulf %22, %24 : vector<8x16x32xf32>
    %cst_18 = arith.constant dense<0.000000e+00> : vector<8x16xf32>
    %26 = vector.multi_reduction <add>, %25, %cst_18 [2] : vector<8x16x32xf32> to vector<8x16xf32>
    %c0_19 = arith.constant 0 : index
    %c0_20 = arith.constant 0 : index
    %c0_21 = arith.constant 0 : index
    %c0_22 = arith.constant 0 : index
    %27 = vector.load %arg10[%c0_19, %c0_20, %c0_21, %c0_22] : memref<1x1x8x16xf32, #tpu.memory_space<vmem>>, vector<1x1x8x16xf32>
    %28 = vector.shape_cast %27 : vector<1x1x8x16xf32> to vector<8x16xf32>
    %29 = vector.shape_cast %26 : vector<8x16xf32> to vector<1x1x8x16xf32>
    tpu.vector_store %arg10[%c0_19, %c0_20, %c0_21, %c0_22], %29 {strides = array<i32>} : memref<1x1x8x16xf32, #tpu.memory_space<vmem>>, vector<1x1x8x16xf32>,
    return
  }
  func.func @transform_0(%arg0: i32, %arg1: i32, %arg2: i32) -> (i32, i32, i32) {
    %c0_i32 = arith.constant 0 : i32
    %c0_i32_0 = arith.constant 0 : i32
    %c0_i32_1 = arith.constant 0 : i32
    return %arg1, %c0_i32, %c0_i32_0 : i32, i32, i32
  }
  func.func @transform_1(%arg0: i32, %arg1: i32, %arg2: i32) -> (i32, i32, i32) {
    %c0_i32 = arith.constant 0 : i32
    %c0_i32_0 = arith.constant 0 : i32
    return %arg1, %arg2, %c0_i32 : i32, i32, i32
  }
  func.func @transform_2(%arg0: i32, %arg1: i32, %arg2: i32) -> (i32, i32, i32) {
    %c0_i32 = arith.constant 0 : i32
    %c0_i32_0 = arith.constant 0 : i32
    %c0_i32_1 = arith.constant 0 : i32
    return %arg0, %c0_i32, %c0_i32_0 : i32, i32, i32
  }
  func.func @transform_3(%arg0: i32, %arg1: i32, %arg2: i32) -> (i32, i32, i32) {
    %c0_i32 = arith.constant 0 : i32
    %c0_i32_0 = arith.constant 0 : i32
    %c0_i32_1 = arith.constant 0 : i32
    return %arg0, %c0_i32, %c0_i32_0 : i32, i32, i32
  }
  func.func @transform_4(%arg0: i32, %arg1: i32, %arg2: i32) -> (i32, i32, i32) {
    %c0_i32 = arith.constant 0 : i32
    %c0_i32_0 = arith.constant 0 : i32
    %c0_i32_1 = arith.constant 0 : i32
    return %arg0, %c0_i32, %c0_i32_0 : i32, i32, i32
  }
  func.func @transform_5(%arg0: i32, %arg1: i32, %arg2: i32) -> (i32, i32, i32) {
    %c0_i32 = arith.constant 0 : i32
    %c0_i32_0 = arith.constant 0 : i32
    %c0_i32_1 = arith.constant 0 : i32
    return %arg0, %c0_i32, %c0_i32_0 : i32, i32, i32
  }
  func.func @transform_6(%arg0: i32, %arg1: i32, %arg2: i32) -> (i32, i32, i32) {
    %c0_i32 = arith.constant 0 : i32
    %c0_i32_0 = arith.constant 0 : i32
    %c0_i32_1 = arith.constant 0 : i32
    return %arg0, %c0_i32, %c0_i32_0 : i32, i32, i32
  }
  func.func @transform_7(%arg0: i32, %arg1: i32, %arg2: i32) -> (i32, i32, i32, i32) {
    %c0_i32 = arith.constant 0 : i32
    %c0_i32_0 = arith.constant 0 : i32
    return %arg0, %arg1, %c0_i32, %arg2 : i32, i32, i32, i32
  }
}

</mosaic_0001>

<llo_original>
// kernel: set_decoder_forward.4
$region0: #{set_decoder_forward.4}
  #allocation0 [shape = 'u32[]', space=smem, size = 0x4, offset = 0x4, fixed_abs, tag = 'smem constant byte address 0x4 - core index']
  #allocation1 [shape = 'u32[144,128]{1,0:T(1,128)}', space=vmem, size = 0x12000, scoped, tag = 'internal scratch']
  %s0 = inlined_call_operand.vmem [shape: bf16[32,32], index: 0, kind: input, shape index: {}]
  %s1 = inlined_call_operand.vmem [shape: bf16[32,32], index: 1, kind: input, shape index: {}]
  %s2 = inlined_call_operand.vmem [shape: f32[32,32], index: 2, kind: output, shape index: {}]
  %s3 = sld [smem:[#allocation0]]
  $region18: #{set_decoder_forward.4} parent=0
    _
  %s5 = ssub.s32 1, %s3
  %s6 = scalar_select 0, %s5, %s3
  // Predicated region
  $region2: #{set_decoder_forward.4} parent=0 // pred_check
    _
  $region3: #{set_decoder_forward.4} parent=0 // pred_check_branch
    %8 = sbr.rel (0) target = $region5
  $region4: #{set_decoder_forward.4} parent=0 // pred_region
    _
  $region5: #{set_decoder_forward.4} parent=0 // pred_fallthru
    _
  // Predicated region
  $region6: #{set_decoder_forward.4} parent=0 // pred_check
    _
  $region7: #{set_decoder_forward.4} parent=0 // pred_check_branch
    %10 = sbr.rel (0) target = $region9
  $region8: #{set_decoder_forward.4} parent=0 // pred_region
    _
  $region9: #{set_decoder_forward.4} parent=0 // pred_fallthru
    _
  %v12 = vld [vmem:[%s0] sm:$0xf]
  %v13 = vld [vmem:[%s0 + $0x4] sm:$0xf]
  %v14 = vld [vmem:[%s0 + $0x8] sm:$0xf]
  %v15 = vld [vmem:[%s0 + $0xc] sm:$0xf]
  %v16 = vld [vmem:[%s1] sm:$0xf]
  %v17 = vld [vmem:[%s1 + $0x4] sm:$0xf]
  %v18 = vld [vmem:[%s1 + $0x8] sm:$0xf]
  %v19 = vld [vmem:[%s1 + $0xc] sm:$0xf]
  %v24 = vunpack.c.l.b16 %v12
  %v25 = vunpack.c.l.b16 %v13
  %v26 = vunpack.c.l.b16 %v14
  %v27 = vunpack.c.l.b16 %v15
  %v28 = vpack.c.b16 %v25, %v24
  %v29 = vpack.c.b16 %v27, %v26
  %v34 = vunpack.c.l.b16 %v16
  %v35 = vunpack.c.l.b16 %v17
  %v36 = vunpack.c.l.b16 %v18
  %v37 = vunpack.c.l.b16 %v19
  %v38 = vpack.c.b16 %v35, %v34
  %v39 = vpack.c.b16 %v37, %v36
  %vm42 = vcmask 261120
  %v44 = vsel %vm42, %v28, 0
  %v47 = vsel %vm42, %v29, 0
  %49 = vmatprep.subr.bf16.mxu0 0
  %50 = vmatpush1.bf16.msra.mxu0 %v38
  %51 = vmatprep.subr.bf16.mxu0 0
  %52 = vmatpush1.bf16.msra.mxu0 %v39
  %53 = vmatprep.subr.bf16.mxu0 0
  %54 = vmatpush1.bf16.msra.mxu0 0
  %55 = vmatprep.subr.bf16.mxu0 0
  %56 = vmatpush1.bf16.msra.mxu0 0
  %57 = vmatprep.subr.bf16.mxu0 0
  %58 = vmatpush1.bf16.msra.mxu0 0
  %59 = vmatprep.subr.bf16.mxu0 0
  %60 = vmatpush1.bf16.msra.mxu0 0
  %61 = vmatprep.subr.bf16.mxu0 0
  %62 = vmatpush1.bf16.msra.mxu0 0
  %63 = vmatprep.subr.bf16.mxu0 0
  %64 = vmatpush1.bf16.msra.mxu0 0
  %65 = vmatprep.subr.bf16.mxu0 0
  %66 = vmatpush1.bf16.msra.mxu0 0
  %67 = vmatprep.subr.bf16.mxu0 0
  %68 = vmatpush1.bf16.msra.mxu0 0
  %69 = vmatprep.subr.bf16.mxu0 0
  %70 = vmatpush1.bf16.msra.mxu0 0
  %71 = vmatprep.subr.bf16.mxu0 0
  %72 = vmatpush1.bf16.msra.mxu0 0
  %73 = vmatprep.subr.bf16.mxu0 0
  %74 = vmatpush1.bf16.msra.mxu0 0
  %75 = vmatprep.subr.bf16.mxu0 0
  %76 = vmatpush1.bf16.msra.mxu0 0
  %77 = vmatprep.subr.bf16.mxu0 0
  %78 = vmatpush1.bf16.msra.mxu0 0
  %79 = vmatprep.subr.bf16.mxu0 0
  %80 = vmatpush1.bf16.msra.mxu0 0
  %81 = vmatprep.mubr.bf16.mxu0 0
  %82 = vmatmul.mubr.bf16.gmra.mrb[0].mxu0 %v44
  %v83 = vpop.f32.mrb[0].mxu0
  %v84 = vadd.f32 0.0, %v83
  %v85 = vpop.f32.mrb[0].mxu0
  %v86 = vpop.f32.mrb[0].mxu0
  %v87 = vadd.f32 0.0, %v86
  %v88 = vpop.f32.mrb[0].mxu0
  %89 = vmatprep.mubr.bf16.mxu0 0
  %90 = vmatmul.mubr.bf16.gmra.mrb[0].mxu0 %v47
  %v91 = vpop.f32.mrb[0].mxu0
  %v92 = vadd.f32 0.0, %v91
  %v93 = vpop.f32.mrb[0].mxu0
  %v94 = vpop.f32.mrb[0].mxu0
  %v95 = vadd.f32 0.0, %v94
  %v96 = vpop.f32.mrb[0].mxu0
  %97 = vdwg.mxu0
  %98 = vst.msk [vmem:[%s2] sm:$0xff] %vm42, %v84
  %99 = vst.msk [vmem:[%s2 + $0x8] sm:$0xff] %vm42, %v87
  %100 = vst.msk [vmem:[%s2 + $0x10] sm:$0xff] %vm42, %v92
  %101 = vst.msk [vmem:[%s2 + $0x18] sm:$0xff] %vm42, %v95
  // Predicated region
  $region10: #{set_decoder_forward.4} parent=0 // pred_check
    _
  $region11: #{set_decoder_forward.4} parent=0 // pred_check_branch
    %103 = sbr.rel (0) target = $region13
  $region12: #{set_decoder_forward.4} parent=0 // pred_region
    _
  $region13: #{set_decoder_forward.4} parent=0 // pred_fallthru
    _
  // Predicated region
  $region14: #{set_decoder_forward.4} parent=0 // pred_check
    _
  $region15: #{set_decoder_forward.4} parent=0 // pred_check_branch
    %105 = sbr.rel (0) target = $region17
  $region16: #{set_decoder_forward.4} parent=0 // pred_region
    _
  $region17: #{set_decoder_forward.4} parent=0 // pred_fallthru
    _

// kernel: set_decoder_forward.5
$region0: #{set_decoder_forward.5}
  #allocation0 [shape = 'u32[]', space=smem, size = 0x4, offset = 0x4, fixed_abs, tag = 'smem constant byte address 0x4 - core index']
  #allocation1 [shape = 'u32[144,128]{1,0:T(1,128)}', space=vmem, size = 0x12000, scoped, tag = 'internal scratch']
  %s0 = inlined_call_operand.vmem [shape: bf16[32,32], index: 0, kind: input, shape index: {}]
  %s1 = inlined_call_operand.vmem [shape: bf16[32,64], index: 1, kind: input, shape index: {}]
  %s2 = inlined_call_operand.vmem [shape: f32[1,64], index: 2, kind: input, shape index: {}]
  %s3 = inlined_call_operand.vmem [shape: f32[32,64], index: 3, kind: output, shape index: {}]
  %s4 = sld [smem:[#allocation0]]
  $region22: #{set_decoder_forward.5} parent=0
    _
  %s6 = ssub.s32 1, %s4
  %s7 = scalar_select 0, %s6, %s4
  // Predicated region
  $region2: #{set_decoder_forward.5} parent=0 // pred_check
    _
  $region3: #{set_decoder_forward.5} parent=0 // pred_check_branch
    %9 = sbr.rel (0) target = $region5
  $region4: #{set_decoder_forward.5} parent=0 // pred_region
    _
  $region5: #{set_decoder_forward.5} parent=0 // pred_fallthru
    _
  // Predicated region
  $region6: #{set_decoder_forward.5} parent=0 // pred_check
    _
  $region7: #{set_decoder_forward.5} parent=0 // pred_check_branch
    %11 = sbr.rel (0) target = $region9
  $region8: #{set_decoder_forward.5} parent=0 // pred_region
    _
  $region9: #{set_decoder_forward.5} parent=0 // pred_fallthru
    _
  // Predicated region
  $region10: #{set_decoder_forward.5} parent=0 // pred_check
    _
  $region11: #{set_decoder_forward.5} parent=0 // pred_check_branch
    %13 = sbr.rel (0) target = $region13
  $region12: #{set_decoder_forward.5} parent=0 // pred_region
    _
  $region13: #{set_decoder_forward.5} parent=0 // pred_fallthru
    _
  %v15 = vld [vmem:[%s0] sm:$0xf]
  %v16 = vld [vmem:[%s0 + $0x4] sm:$0xf]
  %v17 = vld [vmem:[%s0 + $0x8] sm:$0xf]
  %v18 = vld [vmem:[%s0 + $0xc] sm:$0xf]
  %v19 = vld [vmem:[%s1] sm:$0xf]
  %v20 = vld [vmem:[%s1 + $0x4] sm:$0xf]
  %v21 = vld [vmem:[%s1 + $0x8] sm:$0xf]
  %v22 = vld [vmem:[%s1 + $0xc] sm:$0xf]
  %v23 = vld [vmem:[%s2] sm:$0x1]
  %v25 = vlaneseq
  %v26 = vshrl.u32 %v25, 7
  %v27 = vsub.s32 0, %v26
  %v28 = vrot.slane %v23, %v27
  %v34 = vunpack.c.l.b16 %v15
  %v35 = vunpack.c.l.b16 %v16
  %v36 = vunpack.c.l.b16 %v17
  %v37 = vunpack.c.l.b16 %v18
  %v38 = vpack.c.b16 %v35, %v34
  %v39 = vpack.c.b16 %v37, %v36
  %v44 = vunpack.c.l.b16 %v19
  %v45 = vunpack.c.l.b16 %v20
  %v46 = vunpack.c.l.b16 %v21
  %v47 = vunpack.c.l.b16 %v22
  %v48 = vpack.c.b16 %v45, %v44
  %v49 = vpack.c.b16 %v47, %v46
  %vm52 = vcmask 261120
  %v54 = vsel %vm52, %v38, 0
  %v57 = vsel %vm52, %v39, 0
  %59 = vmatprep.subr.bf16.mxu0 0
  %60 = vmatpush1.bf16.msra.mxu0 %v48
  %61 = vmatprep.subr.bf16.mxu0 0
  %62 = vmatpush1.bf16.msra.mxu0 %v49
  %63 = vmatprep.subr.bf16.mxu0 0
  %64 = vmatpush1.bf16.msra.mxu0 0
  %65 = vmatprep.subr.bf16.mxu0 0
  %66 = vmatpush1.bf16.msra.mxu0 0
  %67 = vmatprep.subr.bf16.mxu0 0
  %68 = vmatpush1.bf16.msra.mxu0 0
  %69 = vmatprep.subr.bf16.mxu0 0
  %70 = vmatpush1.bf16.msra.mxu0 0
  %71 = vmatprep.subr.bf16.mxu0 0
  %72 = vmatpush1.bf16.msra.mxu0 0
  %73 = vmatprep.subr.bf16.mxu0 0
  %74 = vmatpush1.bf16.msra.mxu0 0
  %75 = vmatprep.subr.bf16.mxu0 0
  %76 = vmatpush1.bf16.msra.mxu0 0
  %77 = vmatprep.subr.bf16.mxu0 0
  %78 = vmatpush1.bf16.msra.mxu0 0
  %79 = vmatprep.subr.bf16.mxu0 0
  %80 = vmatpush1.bf16.msra.mxu0 0
  %81 = vmatprep.subr.bf16.mxu0 0
  %82 = vmatpush1.bf16.msra.mxu0 0
  %83 = vmatprep.subr.bf16.mxu0 0
  %84 = vmatpush1.bf16.msra.mxu0 0
  %85 = vmatprep.subr.bf16.mxu0 0
  %86 = vmatpush1.bf16.msra.mxu0 0
  %87 = vmatprep.subr.bf16.mxu0 0
  %88 = vmatpush1.bf16.msra.mxu0 0
  %89 = vmatprep.subr.bf16.mxu0 0
  %90 = vmatpush1.bf16.msra.mxu0 0
  %91 = vmatprep.mubr.bf16.mxu0 0
  %92 = vmatmul.mubr.bf16.gmra.mrb[0].mxu0 %v54
  %v93 = vpop.f32.mrb[0].mxu0
  %v94 = vadd.f32 %v28, %v93
  %v95 = vpop.f32.mrb[0].mxu0
  %v96 = vpop.f32.mrb[0].mxu0
  %v97 = vadd.f32 %v28, %v96
  %v98 = vpop.f32.mrb[0].mxu0
  %99 = vmatprep.mubr.bf16.mxu0 0
  %100 = vmatmul.mubr.bf16.gmra.mrb[0].mxu0 %v57
  %v101 = vpop.f32.mrb[0].mxu0
  %v102 = vadd.f32 %v28, %v101
  %v103 = vpop.f32.mrb[0].mxu0
  %v104 = vpop.f32.mrb[0].mxu0
  %v105 = vadd.f32 %v28, %v104
  %v106 = vpop.f32.mrb[0].mxu0
  %107 = vdwg.mxu0
  %vm108 = vcmask 523264
  %109 = vst.msk [vmem:[%s3] sm:$0xff] %vm108, %v94
  %110 = vst.msk [vmem:[%s3 + $0x8] sm:$0xff] %vm108, %v97
  %111 = vst.msk [vmem:[%s3 + $0x10] sm:$0xff] %vm108, %v102
  %112 = vst.msk [vmem:[%s3 + $0x18] sm:$0xff] %vm108, %v105
  // Predicated region
  $region14: #{set_decoder_forward.5} parent=0 // pred_check
    _
  $region15: #{set_decoder_forward.5} parent=0 // pred_check_branch
    %114 = sbr.rel (0) target = $region17
  $region16: #{set_decoder_forward.5} parent=0 // pred_region
    _
  $region17: #{set_decoder_forward.5} parent=0 // pred_fallthru
    _
  // Predicated region
  $region18: #{set_decoder_forward.5} parent=0 // pred_check
    _
  $region19: #{set_decoder_forward.5} parent=0 // pred_check_branch
    %116 = sbr.rel (0) target = $region21
  $region20: #{set_decoder_forward.5} parent=0 // pred_region
    _
  $region21: #{set_decoder_forward.5} parent=0 // pred_fallthru
    _

// kernel: set_decoder_forward.7
$region0: #{set_decoder_forward.7}
  #allocation0 [shape = 'u32[]', space=smem, size = 0x4, offset = 0x4, fixed_abs, tag = 'smem constant byte address 0x4 - core index']
  #allocation1 [shape = 'u32[144,128]{1,0:T(1,128)}', space=vmem, size = 0x12000, scoped, tag = 'internal scratch']
  #allocation2 [shape = 'f32[8,32]{1,0:T(8,128)}', space=vmem, size = 0x1000, scoped, tag = 'scratch operand']
  #allocation3 [shape = 'f32[16,32]{1,0:T(8,128)}', space=vmem, size = 0x2000, scoped, tag = 'scratch operand']
  %s0 = inlined_call_operand.vmem [shape: bf16[2,8,32], index: 0, kind: input, shape index: {}]
  %s1 = inlined_call_operand.vmem [shape: bf16[2,16,32], index: 1, kind: input, shape index: {}]
  %s2 = inlined_call_operand.vmem [shape: bf16[4,32,32], index: 2, kind: input, shape index: {}]
  %s3 = inlined_call_operand.vmem [shape: f32[4,1,32], index: 3, kind: input, shape index: {}]
  %s4 = inlined_call_operand.vmem [shape: bf16[4,32,32], index: 4, kind: input, shape index: {}]
  %s5 = inlined_call_operand.vmem [shape: f32[4,1,32], index: 5, kind: input, shape index: {}]
  %s6 = inlined_call_operand.vmem [shape: f32[4,1,32], index: 6, kind: input, shape index: {}]
  %s7 = inlined_call_operand.vmem [shape: f32[4,2,8,16], index: 7, kind: output, shape index: {}]
  %s8 = sld [smem:[#allocation0]]
  $region65: #{set_decoder_forward.7} parent=0
    _
  %s10 = ssub.s32 1, %s8
  %s11 = scalar_select 0, %s10, %s8
  loop: start=0, step=1, limit=10
  $region2: #{set_decoder_forward.7} parent=0 // loop_pre_header
    _
  $region3: #{set_decoder_forward.7} parent=0 // loop_header
    %s13 = sphi 0, %s17
    %p14 = scmp.ge.s32.totalorder %s13, 10
    %s20 = sphi 0, %s39
    %s21 = sphi 0, %s35
    %s22 = sphi 0, %s31
    %s23 = sphi 0, %s20
    %s24 = sphi 0, %s21
    %s25 = sphi 0, %s22
    %s26 = sphi 0, %s23
    %s27 = sphi 0, %s24
    %s28 = sphi 0, %s25
    %s42 = sphi 0, %s44
    %s45 = sphi 0, %s42
    %s46 = sphi 0, %s45
    %s62 = sphi 0, %s46
    %s70 = sphi 0, %s72
    %s73 = sphi 0, %s70
    %s74 = sphi 0, %s73
    %s90 = sphi 0, %s74
    %s96 = sphi 0, %s98
    %s99 = sphi 0, %s96
    %s100 = sphi 0, %s99
    %s116 = sphi 0, %s100
    %s122 = sphi 0, %s124
    %s125 = sphi 0, %s122
    %s126 = sphi 0, %s125
    %s142 = sphi 0, %s126
    %s148 = sphi 0, %s150
    %s151 = sphi 0, %s148
    %s152 = sphi 0, %s151
    %s168 = sphi 0, %s152
    %s174 = sphi 0, %s176
    %s177 = sphi 0, %s174
    %s178 = sphi 0, %s177
    %s194 = sphi 0, %s178
    %s200 = sphi 0, %s202
    %s203 = sphi 0, %s200
    %s204 = sphi 0, %s203
    %s220 = sphi 0, %s204
    %s230 = sphi 0, %s232
    %s233 = sphi 0, %s230
    %s234 = sphi 0, %s233
    %s250 = sphi 0, %s234
  $region4: #{set_decoder_forward.7} parent=0 // loop_header_branch
    %16 = sbr.rel (%p14) target = $region8
  $region5: #{set_decoder_forward.7} parent=0 // loop_body
    %s18 = ssub.s32 %s13, 1
    %s19 = ssub.s32 %s13, 2
    %s29 = sadd.s32 1, %s22
    %p30 = scmp.ge.s32.totalorder %s29, 1
    %s31 = scalar_select %p30, 0, %s29
    %s32 = sadd.s32 1, %s21
    %s33 = scalar_select %p30, %s32, %s21
    %p34 = scmp.ge.s32.totalorder %s33, 2
    %s35 = scalar_select %p34, 0, %s33
    %s36 = sadd.s32 1, %s20
    %s37 = scalar_select %p34, %s36, %s20
    %p38 = scmp.ge.s32.totalorder %s37, 4
    %s39 = scalar_select %p38, 0, %s37
    %s40 = ssub.s32 %s21, %s35
    %p41 = scmp.eq.s32.totalorder %s40, 0
    %s43 = sadd.s32 %s42, 1
    %s44 = scalar_select %p41, %s42, %s43
    %p47 = pneg %p41
    %p48 = scmp.eq.s32.totalorder %s13, 7
    %p49 = por %p47, %p48
    %p50 = scmp.ne.s32.totalorder %s42, %s45
    %p51 = scmp.eq.s32.totalorder %s13, 0
    %p52 = por %p50, %p51
    %p53 = scmp.ne.s32.totalorder %s42, %s45
    %p54 = scmp.eq.s32.totalorder %s18, 7
    %p55 = por %p53, %p54
    %p56 = scmp.ne.s32.totalorder %s45, %s46
    %p57 = scmp.eq.s32.totalorder %s18, 0
    %p58 = por %p56, %p57
    %p59 = scmp.ne.s32.totalorder %s45, %s46
    %p60 = scmp.eq.s32.totalorder %s19, 7
    %p61 = por %p59, %p60
    %p63 = scmp.ne.s32.totalorder %s46, %s62
    %p64 = scmp.eq.s32.totalorder %s19, 0
    %p65 = por %p63, %p64
    %s66 = ssub.s32 %s21, %s35
    %s67 = ssub.s32 %s22, %s31
    %s68 = sor.u32 %s66, %s67
    %p69 = scmp.eq.s32.totalorder %s68, 0
    %s71 = sadd.s32 %s70, 1
    %s72 = scalar_select %p69, %s70, %s71
    %p75 = pneg %p69
    %p76 = scmp.eq.s32.totalorder %s13, 7
    %p77 = por %p75, %p76
    %p78 = scmp.ne.s32.totalorder %s70, %s73
    %p79 = scmp.eq.s32.totalorder %s13, 0
    %p80 = por %p78, %p79
    %p81 = scmp.ne.s32.totalorder %s70, %s73
    %p82 = scmp.eq.s32.totalorder %s18, 7
    %p83 = por %p81, %p82
    %p84 = scmp.ne.s32.totalorder %s73, %s74
    %p85 = scmp.eq.s32.totalorder %s18, 0
    %p86 = por %p84, %p85
    %p87 = scmp.ne.s32.totalorder %s73, %s74
    %p88 = scmp.eq.s32.totalorder %s19, 7
    %p89 = por %p87, %p88
    %p91 = scmp.ne.s32.totalorder %s74, %s90
    %p92 = scmp.eq.s32.totalorder %s19, 0
    %p93 = por %p91, %p92
    %s94 = ssub.s32 %s20, %s39
    %p95 = scmp.eq.s32.totalorder %s94, 0
    %s97 = sadd.s32 %s96, 1
    %s98 = scalar_select %p95, %s96, %s97
    %p101 = pneg %p95
    %p102 = scmp.eq.s32.totalorder %s13, 7
    %p103 = por %p101, %p102
    %p104 = scmp.ne.s32.totalorder %s96, %s99
    %p105 = scmp.eq.s32.totalorder %s13, 0
    %p106 = por %p104, %p105
    %p107 = scmp.ne.s32.totalorder %s96, %s99
    %p108 = scmp.eq.s32.totalorder %s18, 7
    %p109 = por %p107, %p108
    %p110 = scmp.ne.s32.totalorder %s99, %s100
    %p111 = scmp.eq.s32.totalorder %s18, 0
    %p112 = por %p110, %p111
    %p113 = scmp.ne.s32.totalorder %s99, %s100
    %p114 = scmp.eq.s32.totalorder %s19, 7
    %p115 = por %p113, %p114
    %p117 = scmp.ne.s32.totalorder %s100, %s116
    %p118 = scmp.eq.s32.totalorder %s19, 0
    %p119 = por %p117, %p118
    %s120 = ssub.s32 %s20, %s39
    %p121 = scmp.eq.s32.totalorder %s120, 0
    %s123 = sadd.s32 %s122, 1
    %s124 = scalar_select %p121, %s122, %s123
    %p127 = pneg %p121
    %p128 = scmp.eq.s32.totalorder %s13, 7
    %p129 = por %p127, %p128
    %p130 = scmp.ne.s32.totalorder %s122, %s125
    %p131 = scmp.eq.s32.totalorder %s13, 0
    %p132 = por %p130, %p131
    %p133 = scmp.ne.s32.totalorder %s122, %s125
    %p134 = scmp.eq.s32.totalorder %s18, 7
    %p135 = por %p133, %p134
    %p136 = scmp.ne.s32.totalorder %s125, %s126
    %p137 = scmp.eq.s32.totalorder %s18, 0
    %p138 = por %p136, %p137
    %p139 = scmp.ne.s32.totalorder %s125, %s126
    %p140 = scmp.eq.s32.totalorder %s19, 7
    %p141 = por %p139, %p140
    %p143 = scmp.ne.s32.totalorder %s126, %s142
    %p144 = scmp.eq.s32.totalorder %s19, 0
    %p145 = por %p143, %p144
    %s146 = ssub.s32 %s20, %s39
    %p147 = scmp.eq.s32.totalorder %s146, 0
    %s149 = sadd.s32 %s148, 1
    %s150 = scalar_select %p147, %s148, %s149
    %p153 = pneg %p147
    %p154 = scmp.eq.s32.totalorder %s13, 7
    %p155 = por %p153, %p154
    %p156 = scmp.ne.s32.totalorder %s148, %s151
    %p157 = scmp.eq.s32.totalorder %s13, 0
    %p158 = por %p156, %p157
    %p159 = scmp.ne.s32.totalorder %s148, %s151
    %p160 = scmp.eq.s32.totalorder %s18, 7
    %p161 = por %p159, %p160
    %p162 = scmp.ne.s32.totalorder %s151, %s152
    %p163 = scmp.eq.s32.totalorder %s18, 0
    %p164 = por %p162, %p163
    %p165 = scmp.ne.s32.totalorder %s151, %s152
    %p166 = scmp.eq.s32.totalorder %s19, 7
    %p167 = por %p165, %p166
    %p169 = scmp.ne.s32.totalorder %s152, %s168
    %p170 = scmp.eq.s32.totalorder %s19, 0
    %p171 = por %p169, %p170
    %s172 = ssub.s32 %s20, %s39
    %p173 = scmp.eq.s32.totalorder %s172, 0
    %s175 = sadd.s32 %s174, 1
    %s176 = scalar_select %p173, %s174, %s175
    %p179 = pneg %p173
    %p180 = scmp.eq.s32.totalorder %s13, 7
    %p181 = por %p179, %p180
    %p182 = scmp.ne.s32.totalorder %s174, %s177
    %p183 = scmp.eq.s32.totalorder %s13, 0
    %p184 = por %p182, %p183
    %p185 = scmp.ne.s32.totalorder %s174, %s177
    %p186 = scmp.eq.s32.totalorder %s18, 7
    %p187 = por %p185, %p186
    %p188 = scmp.ne.s32.totalorder %s177, %s178
    %p189 = scmp.eq.s32.totalorder %s18, 0
    %p190 = por %p188, %p189
    %p191 = scmp.ne.s32.totalorder %s177, %s178
    %p192 = scmp.eq.s32.totalorder %s19, 7
    %p193 = por %p191, %p192
    %p195 = scmp.ne.s32.totalorder %s178, %s194
    %p196 = scmp.eq.s32.totalorder %s19, 0
    %p197 = por %p195, %p196
    %s198 = ssub.s32 %s20, %s39
    %p199 = scmp.eq.s32.totalorder %s198, 0
    %s201 = sadd.s32 %s200, 1
    %s202 = scalar_select %p199, %s200, %s201
    %p205 = pneg %p199
    %p206 = scmp.eq.s32.totalorder %s13, 7
    %p207 = por %p205, %p206
    %p208 = scmp.ne.s32.totalorder %s200, %s203
    %p209 = scmp.eq.s32.totalorder %s13, 0
    %p210 = por %p208, %p209
    %p211 = scmp.ne.s32.totalorder %s200, %s203
    %p212 = scmp.eq.s32.totalorder %s18, 7
    %p213 = por %p211, %p212
    %p214 = scmp.ne.s32.totalorder %s203, %s204
    %p215 = scmp.eq.s32.totalorder %s18, 0
    %p216 = por %p214, %p215
    %p217 = scmp.ne.s32.totalorder %s203, %s204
    %p218 = scmp.eq.s32.totalorder %s19, 7
    %p219 = por %p217, %p218
    %p221 = scmp.ne.s32.totalorder %s204, %s220
    %p222 = scmp.eq.s32.totalorder %s19, 0
    %p223 = por %p221, %p222
    %s224 = ssub.s32 %s20, %s39
    %s225 = ssub.s32 %s21, %s35
    %s226 = sor.u32 %s224, %s225
    %s227 = ssub.s32 %s22, %s31
    %s228 = sor.u32 %s226, %s227
    %p229 = scmp.eq.s32.totalorder %s228, 0
    %s231 = sadd.s32 %s230, 1
    %s232 = scalar_select %p229, %s230, %s231
    %p235 = pneg %p229
    %p236 = scmp.eq.s32.totalorder %s13, 7
    %p237 = por %p235, %p236
    %p238 = scmp.ne.s32.totalorder %s230, %s233
    %p239 = scmp.eq.s32.totalorder %s13, 0
    %p240 = por %p238, %p239
    %p241 = scmp.ne.s32.totalorder %s230, %s233
    %p242 = scmp.eq.s32.totalorder %s18, 7
    %p243 = por %p241, %p242
    %p244 = scmp.ne.s32.totalorder %s233, %s234
    %p245 = scmp.eq.s32.totalorder %s18, 0
    %p246 = por %p244, %p245
    %p247 = scmp.ne.s32.totalorder %s233, %s234
    %p248 = scmp.eq.s32.totalorder %s19, 7
    %p249 = por %p247, %p248
    %p251 = scmp.ne.s32.totalorder %s234, %s250
    %p252 = scmp.eq.s32.totalorder %s19, 0
    %p253 = por %p251, %p252
    %p254 = scmp.le.s32.totalorder 1, %s13
    %p255 = scmp.lt.s32.totalorder %s13, 9
    %p256 = pnand %p254, %p255
    %p257 = pneg %p256
    // Predicated region
    $region9: #{set_decoder_forward.7} parent=5 // pred_check
      _
    $region10: #{set_decoder_forward.7} parent=5 // pred_check_branch
      %259 = sbr.rel (%p256) target = $region12
    $region11: #{set_decoder_forward.7} parent=5 // pred_region
      %s260 = ssub.s32 %s13, 1
    $region12: #{set_decoder_forward.7} parent=5 // pred_fallthru
      _
    %p261 = scmp.lt.s32.totalorder %s13, 8
    // Predicated region
    $region13: #{set_decoder_forward.7} parent=5 // pred_check
      %p262 = pneg %p261
    $region14: #{set_decoder_forward.7} parent=5 // pred_check_branch
      %264 = sbr.rel (%p262) target = $region16
    $region15: #{set_decoder_forward.7} parent=5 // pred_region
      // Predicated region
      $region17: #{set_decoder_forward.7} parent=15 // pred_check
        %p265 = pneg %p52
      $region18: #{set_decoder_forward.7} parent=15 // pred_check_branch
        %267 = sbr.rel (%p265) target = $region20
      $region19: #{set_decoder_forward.7} parent=15 // pred_region
        %p268 = scmp.lt.s32.totalorder %s21, 1
        %s269 = scalar_select %p268, %s21, 1
        %s270 = smul.addr %s269, 4
        %s271 = scalar_lea.vmem %s0, %s270
      $region20: #{set_decoder_forward.7} parent=15 // pred_fallthru
        _
      // Predicated region
      $region21: #{set_decoder_forward.7} parent=15 // pred_check
        %p272 = pneg %p80
      $region22: #{set_decoder_forward.7} parent=15 // pred_check_branch
        %274 = sbr.rel (%p272) target = $region24
      $region23: #{set_decoder_forward.7} parent=15 // pred_region
        %s275 = smul.u32 2, %s22
        %p276 = scmp.lt.s32.totalorder %s21, 1
        %s277 = scalar_select %p276, %s21, 1
        %p278 = scmp.lt.s32.totalorder %s275, 1
        %s279 = scalar_select %p278, %s275, 1
        %s280 = smul.addr %s277, 2
        %s281 = sadd.s32 %s279, %s280
        %s282 = smul.addr %s281, 4
        %s283 = scalar_lea.vmem %s1, %s282
        %s284 = smul.u32 2, %s22
      $region24: #{set_decoder_forward.7} parent=15 // pred_fallthru
        _
      // Predicated region
      $region25: #{set_decoder_forward.7} parent=15 // pred_check
        %p285 = pneg %p106
      $region26: #{set_decoder_forward.7} parent=15 // pred_check_branch
        %287 = sbr.rel (%p285) target = $region28
      $region27: #{set_decoder_forward.7} parent=15 // pred_region
        %p288 = scmp.lt.s32.totalorder %s20, 3
        %s289 = scalar_select %p288, %s20, 3
        %s290 = smul.addr %s289, 4
        %s291 = smul.addr %s290, 4
        %s292 = scalar_lea.vmem %s2, %s291
      $region28: #{set_decoder_forward.7} parent=15 // pred_fallthru
        _
      // Predicated region
      $region29: #{set_decoder_forward.7} parent=15 // pred_check
        %p293 = pneg %p132
      $region30: #{set_decoder_forward.7} parent=15 // pred_check_branch
        %295 = sbr.rel (%p293) target = $region32
      $region31: #{set_decoder_forward.7} parent=15 // pred_region
        %p296 = scmp.lt.s32.totalorder %s20, 3
        %s297 = scalar_select %p296, %s20, 3
        %s298 = scalar_lea.vmem %s3, %s297
      $region32: #{set_decoder_forward.7} parent=15 // pred_fallthru
        _
      // Predicated region
      $region33: #{set_decoder_forward.7} parent=15 // pred_check
        %p299 = pneg %p158
      $region34: #{set_decoder_forward.7} parent=15 // pred_check_branch
        %301 = sbr.rel (%p299) target = $region36
      $region35: #{set_decoder_forward.7} parent=15 // pred_region
        %p302 = scmp.lt.s32.totalorder %s20, 3
        %s303 = scalar_select %p302, %s20, 3
        %s304 = smul.addr %s303, 4
        %s305 = smul.addr %s304, 4
        %s306 = scalar_lea.vmem %s4, %s305
      $region36: #{set_decoder_forward.7} parent=15 // pred_fallthru
        _
      // Predicated region
      $region37: #{set_decoder_forward.7} parent=15 // pred_check
        %p307 = pneg %p184
      $region38: #{set_decoder_forward.7} parent=15 // pred_check_branch
        %309 = sbr.rel (%p307) target = $region40
      $region39: #{set_decoder_forward.7} parent=15 // pred_region
        %p310 = scmp.lt.s32.totalorder %s20, 3
        %s311 = scalar_select %p310, %s20, 3
        %s312 = scalar_lea.vmem %s5, %s311
      $region40: #{set_decoder_forward.7} parent=15 // pred_fallthru
        _
      // Predicated region
      $region41: #{set_decoder_forward.7} parent=15 // pred_check
        %p313 = pneg %p210
      $region42: #{set_decoder_forward.7} parent=15 // pred_check_branch
        %315 = sbr.rel (%p313) target = $region44
      $region43: #{set_decoder_forward.7} parent=15 // pred_region
        %p316 = scmp.lt.s32.totalorder %s20, 3
        %s317 = scalar_select %p316, %s20, 3
        %s318 = scalar_lea.vmem %s6, %s317
      $region44: #{set_decoder_forward.7} parent=15 // pred_fallthru
        _
    $region16: #{set_decoder_forward.7} parent=5 // pred_fallthru
      _
    %p319 = scmp.le.s32.totalorder 1, %s13
    %p320 = scmp.lt.s32.totalorder %s13, 9
    %p321 = pnand %p319, %p320
    %p322 = pneg %p321
    // Predicated region
    $region45: #{set_decoder_forward.7} parent=5 // pred_check
      _
    $region46: #{set_decoder_forward.7} parent=5 // pred_check_branch
      %324 = sbr.rel (%p321) target = $region48
    $region47: #{set_decoder_forward.7} parent=5 // pred_region
      %s325 = ssub.s32 %s13, 1
      %p326 = scmp.lt.s32.totalorder %s24, 1
      %s327 = scalar_select %p326, %s24, 1
      %s328 = smul.addr %s327, 4
      %s329 = scalar_lea.vmem %s0, %s328
      %p330 = pneg %p58
      %p331 = pneg %p55
      %s332 = smul.u32 2, %s25
      %p333 = scmp.lt.s32.totalorder %s24, 1
      %s334 = scalar_select %p333, %s24, 1
      %p335 = scmp.lt.s32.totalorder %s332, 1
      %s336 = scalar_select %p335, %s332, 1
      %s337 = smul.addr %s334, 2
      %s338 = sadd.s32 %s336, %s337
      %s339 = smul.addr %s338, 4
      %s340 = scalar_lea.vmem %s1, %s339
      %p341 = pneg %p86
      %p342 = pneg %p83
      %p343 = scmp.lt.s32.totalorder %s23, 3
      %s344 = scalar_select %p343, %s23, 3
      %s345 = smul.addr %s344, 4
      %s346 = smul.addr %s345, 4
      %s347 = scalar_lea.vmem %s2, %s346
      %p348 = pneg %p112
      %p349 = pneg %p109
      %p350 = scmp.lt.s32.totalorder %s23, 3
      %s351 = scalar_select %p350, %s23, 3
      %s352 = scalar_lea.vmem %s3, %s351
      %p353 = pneg %p138
      %p354 = pneg %p135
      %p355 = scmp.lt.s32.totalorder %s23, 3
      %s356 = scalar_select %p355, %s23, 3
      %s357 = smul.addr %s356, 4
      %s358 = smul.addr %s357, 4
      %s359 = scalar_lea.vmem %s4, %s358
      %p360 = pneg %p164
      %p361 = pneg %p161
      %p362 = scmp.lt.s32.totalorder %s23, 3
      %s363 = scalar_select %p362, %s23, 3
      %s364 = scalar_lea.vmem %s5, %s363
      %p365 = pneg %p190
      %p366 = pneg %p187
      %p367 = scmp.lt.s32.totalorder %s23, 3
      %s368 = scalar_select %p367, %s23, 3
      %s369 = scalar_lea.vmem %s6, %s368
      %p370 = pneg %p216
      %p371 = pneg %p213
      %p372 = pneg %p246
      %p373 = pneg %p243
      %p374 = scmp.lt.s32.totalorder %s23, 3
      %s375 = scalar_select %p374, %s23, 3
      %p376 = scmp.lt.s32.totalorder %s24, 1
      %s377 = scalar_select %p376, %s24, 1
      %p378 = scmp.lt.s32.totalorder %s25, 0
      %s379 = scalar_select %p378, %s25, 0
      %s380 = sadd.s32 %s379, %s377
      %s381 = smul.addr %s375, 2
      %s382 = sadd.s32 %s380, %s381
      %s383 = smul.addr %s382, 8
      %s384 = scalar_lea.vmem %s7, %s383
      %p385 = scmp.lt.s32.totalorder %s24, 1
      %s386 = scalar_select %p385, %s24, 1
      %s387 = smul.addr %s386, 4
      %s388 = scalar_lea.vmem %s0, %s387
      %s389 = smul.u32 2, %s25
      %p390 = scmp.lt.s32.totalorder %s24, 1
      %s391 = scalar_select %p390, %s24, 1
      %p392 = scmp.lt.s32.totalorder %s389, 1
      %s393 = scalar_select %p392, %s389, 1
      %s394 = smul.addr %s391, 2
      %s395 = sadd.s32 %s393, %s394
      %s396 = smul.addr %s395, 4
      %s397 = scalar_lea.vmem %s1, %s396
      %s398 = smul.u32 2, %s25
      %p399 = scmp.lt.s32.totalorder %s23, 3
      %s400 = scalar_select %p399, %s23, 3
      %s401 = smul.addr %s400, 4
      %s402 = smul.addr %s401, 4
      %s403 = scalar_lea.vmem %s2, %s402
      %p404 = scmp.lt.s32.totalorder %s23, 3
      %s405 = scalar_select %p404, %s23, 3
      %s406 = scalar_lea.vmem %s3, %s405
      %p407 = scmp.lt.s32.totalorder %s23, 3
      %s408 = scalar_select %p407, %s23, 3
      %s409 = smul.addr %s408, 4
      %s410 = smul.addr %s409, 4
      %s411 = scalar_lea.vmem %s4, %s410
      %p412 = scmp.lt.s32.totalorder %s23, 3
      %s413 = scalar_select %p412, %s23, 3
      %s414 = scalar_lea.vmem %s5, %s413
      %p415 = scmp.lt.s32.totalorder %s23, 3
      %s416 = scalar_select %p415, %s23, 3
      %s417 = scalar_lea.vmem %s6, %s416
      %p418 = scmp.lt.s32.totalorder %s23, 3
      %s419 = scalar_select %p418, %s23, 3
      %p420 = scmp.lt.s32.totalorder %s24, 1
      %s421 = scalar_select %p420, %s24, 1
      %p422 = scmp.lt.s32.totalorder %s25, 0
      %s423 = scalar_select %p422, %s25, 0
      %s424 = sadd.s32 %s423, %s421
      %s425 = smul.addr %s419, 2
      %s426 = sadd.s32 %s424, %s425
      %s427 = smul.addr %s426, 8
      %s428 = scalar_lea.vmem %s7, %s427
      %p430 = scmp.eq.s32.totalorder %s25, 0
      // Predicated region
      $region49: #{set_decoder_forward.7} parent=47 // pred_check
        %p431 = pneg %p430
      $region50: #{set_decoder_forward.7} parent=47 // pred_check_branch
        %433 = sbr.rel (%p431) target = $region52
      $region51: #{set_decoder_forward.7} parent=47 // pred_region
        %v434 = vld [vmem:[%s388] sm:$0xf]
        %v435 = vld [vmem:[%s403] sm:$0xf]
        %v436 = vld [vmem:[%s403 + $0x4] sm:$0xf]
        %v437 = vld [vmem:[%s403 + $0x8] sm:$0xf]
        %v438 = vld [vmem:[%s403 + $0xc] sm:$0xf]
        %v439 = vld [vmem:[%s406] sm:$0x1]
        %v441 = vlaneseq
        %v442 = vshrl.u32 %v441, 7
        %v443 = vsub.s32 0, %v442
        %v444 = vrot.slane %v439, %v443
        %v450 = vunpack.c.l.b16 %v435
        %v451 = vunpack.c.l.b16 %v436
        %v452 = vunpack.c.l.b16 %v437
        %v453 = vunpack.c.l.b16 %v438
        %v454 = vpack.c.b16 %v451, %v450
        %v455 = vpack.c.b16 %v453, %v452
        %vm458 = vcmask 261120
        %v460 = vsel %vm458, %v434, 0
        %462 = vmatprep.subr.bf16.mxu0 0
        %463 = vmatpush1.bf16.msra.mxu0 %v454
        %464 = vmatprep.subr.bf16.mxu0 0
        %465 = vmatpush1.bf16.msra.mxu0 %v455
        %466 = vmatprep.subr.bf16.mxu0 0
        %467 = vmatpush1.bf16.msra.mxu0 0
        %468 = vmatprep.subr.bf16.mxu0 0
        %469 = vmatpush1.bf16.msra.mxu0 0
        %470 = vmatprep.subr.bf16.mxu0 0
        %471 = vmatpush1.bf16.msra.mxu0 0
        %472 = vmatprep.subr.bf16.mxu0 0
        %473 = vmatpush1.bf16.msra.mxu0 0
        %474 = vmatprep.subr.bf16.mxu0 0
        %475 = vmatpush1.bf16.msra.mxu0 0
        %476 = vmatprep.subr.bf16.mxu0 0
        %477 = vmatpush1.bf16.msra.mxu0 0
        %478 = vmatprep.subr.bf16.mxu0 0
        %479 = vmatpush1.bf16.msra.mxu0 0
        %480 = vmatprep.subr.bf16.mxu0 0
        %481 = vmatpush1.bf16.msra.mxu0 0
        %482 = vmatprep.subr.bf16.mxu0 0
        %483 = vmatpush1.bf16.msra.mxu0 0
        %484 = vmatprep.subr.bf16.mxu0 0
        %485 = vmatpush1.bf16.msra.mxu0 0
        %486 = vmatprep.subr.bf16.mxu0 0
        %487 = vmatpush1.bf16.msra.mxu0 0
        %488 = vmatprep.subr.bf16.mxu0 0
        %489 = vmatpush1.bf16.msra.mxu0 0
        %490 = vmatprep.subr.bf16.mxu0 0
        %491 = vmatpush1.bf16.msra.mxu0 0
        %492 = vmatprep.subr.bf16.mxu0 0
        %493 = vmatpush1.bf16.msra.mxu0 0
        %494 = vmatprep.mubr.bf16.mxu0 0
        %495 = vmatmul.mubr.bf16.gmra.mrb[0].mxu0 %v460
        %v496 = vpop.f32.mrb[0].mxu0
        %v497 = vadd.f32 %v444, %v496
        %v498 = vpop.f32.mrb[0].mxu0
        %v499 = vpop.f32.mrb[0].mxu0
        %v500 = vpop.f32.mrb[0].mxu0
        %501 = vdwg.mxu0
        %502 = vst.msk [vmem:[#allocation2] sm:$0xff] %vm458, %v497
      $region52: #{set_decoder_forward.7} parent=47 // pred_fallthru
        _
      %v503 = vld [vmem:[%s397] sm:$0xf]
      %v504 = vld [vmem:[%s397 + $0x4] sm:$0xf]
      %v505 = vld [vmem:[%s411] sm:$0xf]
      %v506 = vld [vmem:[%s411 + $0x4] sm:$0xf]
      %v507 = vld [vmem:[%s411 + $0x8] sm:$0xf]
      %v508 = vld [vmem:[%s411 + $0xc] sm:$0xf]
      %v509 = vld [vmem:[%s414] sm:$0x1]
      %v511 = vlaneseq
      %v512 = vshrl.u32 %v511, 7
      %v513 = vsub.s32 0, %v512
      %v514 = vrot.slane %v509, %v513
      %v518 = vunpack.c.l.b16 %v503
      %v519 = vunpack.c.l.b16 %v504
      %v520 = vpack.c.b16 %v519, %v518
      %v525 = vunpack.c.l.b16 %v505
      %v526 = vunpack.c.l.b16 %v506
      %v527 = vunpack.c.l.b16 %v507
      %v528 = vunpack.c.l.b16 %v508
      %v529 = vpack.c.b16 %v526, %v525
      %v530 = vpack.c.b16 %v528, %v527
      %vm533 = vcmask 261120
      %v535 = vsel %vm533, %v520, 0
      %537 = vmatprep.subr.bf16.mxu0 0
      %538 = vmatpush1.bf16.msra.mxu0 %v529
      %539 = vmatprep.subr.bf16.mxu0 0
      %540 = vmatpush1.bf16.msra.mxu0 %v530
      %541 = vmatprep.subr.bf16.mxu0 0
      %542 = vmatpush1.bf16.msra.mxu0 0
      %543 = vmatprep.subr.bf16.mxu0 0
      %544 = vmatpush1.bf16.msra.mxu0 0
      %545 = vmatprep.subr.bf16.mxu0 0
      %546 = vmatpush1.bf16.msra.mxu0 0
      %547 = vmatprep.subr.bf16.mxu0 0
      %548 = vmatpush1.bf16.msra.mxu0 0
      %549 = vmatprep.subr.bf16.mxu0 0
      %550 = vmatpush1.bf16.msra.mxu0 0
      %551 = vmatprep.subr.bf16.mxu0 0
      %552 = vmatpush1.bf16.msra.mxu0 0
      %553 = vmatprep.subr.bf16.mxu0 0
      %554 = vmatpush1.bf16.msra.mxu0 0
      %555 = vmatprep.subr.bf16.mxu0 0
      %556 = vmatpush1.bf16.msra.mxu0 0
      %557 = vmatprep.subr.bf16.mxu0 0
      %558 = vmatpush1.bf16.msra.mxu0 0
      %559 = vmatprep.subr.bf16.mxu0 0
      %560 = vmatpush1.bf16.msra.mxu0 0
      %561 = vmatprep.subr.bf16.mxu0 0
      %562 = vmatpush1.bf16.msra.mxu0 0
      %563 = vmatprep.subr.bf16.mxu0 0
      %564 = vmatpush1.bf16.msra.mxu0 0
      %565 = vmatprep.subr.bf16.mxu0 0
      %566 = vmatpush1.bf16.msra.mxu0 0
      %567 = vmatprep.subr.bf16.mxu0 0
      %568 = vmatpush1.bf16.msra.mxu0 0
      %569 = vmatprep.mubr.bf16.mxu0 0
      %570 = vmatmul.mubr.bf16.gmra.mrb[0].mxu0 %v535
      %v571 = vpop.f32.mrb[0].mxu0
      %v572 = vadd.f32 %v514, %v571
      %v573 = vpop.f32.mrb[0].mxu0
      %v574 = vpop.f32.mrb[0].mxu0
      %v575 = vadd.f32 %v514, %v574
      %v576 = vpop.f32.mrb[0].mxu0
      %577 = vdwg.mxu0
      %578 = vst.msk [vmem:[#allocation3] sm:$0xff] %vm533, %v572
      %579 = vst.msk [vmem:[#allocation3 + $0x8] sm:$0xff] %vm533, %v575
      %v580 = vld [vmem:[#allocation2] sm:$0xff]
      %v581 = vld [vmem:[#allocation3] sm:$0xff]
      %v582 = vld [vmem:[#allocation3 + $0x8] sm:$0xff]
      %v583 = vld [vmem:[%s417] sm:$0x1]
      %v585 = vcombine.high %v580, %v580
      %v587 = vunpack.c.l.s4 1966171168
      %v588 = vunpack.c.0.s8 %v587
      %v589 = vlaneseq
      %v590 = vshrl.u32 %v589, 7
      %v591 = vsub.s32 %v588, %v590
      %v592 = vrot.slane %v580, %v591
      %v594 = vunpack.c.l.s4 1966171168
      %v595 = vunpack.c.0.s8 %v594
      %v596 = vlaneseq
      %v597 = vshrl.u32 %v596, 7
      %v598 = vsub.s32 %v595, %v597
      %v599 = vrot.slane %v585, %v598
      %v600 = vcombine.high %v592, %v592
      %v601 = vcombine.high %v599, %v599
      %v603 = vunpack.c.l.s4 1966171168
      %v604 = vunpack.c.0.s8 %v603
      %v605 = vlaneseq
      %v606 = vshrl.u32 %v605, 7
      %v607 = vsub.s32 %v604, %v606
      %v608 = vrot.slane %v592, %v607
      %v610 = vunpack.c.l.s4 1966171168
      %v611 = vunpack.c.0.s8 %v610
      %v612 = vlaneseq
      %v613 = vshrl.u32 %v612, 7
      %v614 = vsub.s32 %v611, %v613
      %v615 = vrot.slane %v599, %v614
      %v617 = vunpack.c.l.s4 1966171168
      %v618 = vunpack.c.0.s8 %v617
      %v619 = vlaneseq
      %v620 = vshrl.u32 %v619, 7
      %v621 = vsub.s32 %v618, %v620
      %v622 = vrot.slane %v600, %v621
      %v624 = vunpack.c.l.s4 1966171168
      %v625 = vunpack.c.0.s8 %v624
      %v626 = vlaneseq
      %v627 = vshrl.u32 %v626, 7
      %v628 = vsub.s32 %v625, %v627
      %v629 = vrot.slane %v601, %v628
      %v630 = vcombine.high %v608, %v608
      %v631 = vcombine.high %v615, %v615
      %v632 = vcombine.high %v622, %v622
      %v633 = vcombine.high %v629, %v629
      %v634 = vlaneseq
      %v635 = vshrl.u32 %v634, 7
      %v636 = vsub.s32 0, %v635
      %v637 = vrot.slane %v608, %v636
      %v638 = vlaneseq
      %v639 = vshrl.u32 %v638, 7
      %v640 = vsub.s32 0, %v639
      %v641 = vrot.slane %v622, %v640
      %v642 = vlaneseq
      %v643 = vshrl.u32 %v642, 7
      %v644 = vsub.s32 0, %v643
      %v645 = vrot.slane %v630, %v644
      %v646 = vlaneseq
      %v647 = vshrl.u32 %v646, 7
      %v648 = vsub.s32 0, %v647
      %v649 = vrot.slane %v632, %v648
      %v650 = vlaneseq
      %v651 = vshrl.u32 %v650, 7
      %v652 = vsub.s32 0, %v651
      %v653 = vrot.slane %v615, %v652
      %v654 = vlaneseq
      %v655 = vshrl.u32 %v654, 7
      %v656 = vsub.s32 0, %v655
      %v657 = vrot.slane %v629, %v656
      %v658 = vlaneseq
      %v659 = vshrl.u32 %v658, 7
      %v660 = vsub.s32 0, %v659
      %v661 = vrot.slane %v631, %v660
      %v662 = vlaneseq
      %v663 = vshrl.u32 %v662, 7
      %v664 = vsub.s32 0, %v663
      %v665 = vrot.slane %v633, %v664
      %v674 = vadd.f32 %v637, %v581
      %v675 = vadd.f32 %v637, %v582
      %v676 = vadd.f32 %v641, %v581
      %v677 = vadd.f32 %v641, %v582
      %v678 = vadd.f32 %v645, %v581
      %v679 = vadd.f32 %v645, %v582
      %v680 = vadd.f32 %v649, %v581
      %v681 = vadd.f32 %v649, %v582
      %v682 = vadd.f32 %v653, %v581
      %v683 = vadd.f32 %v653, %v582
      %v684 = vadd.f32 %v657, %v581
      %v685 = vadd.f32 %v657, %v582
      %v686 = vadd.f32 %v661, %v581
      %v687 = vadd.f32 %v661, %v582
      %v688 = vadd.f32 %v665, %v581
      %v689 = vadd.f32 %v665, %v582
      %v690 = vtanh.pop %v674
      %v691 = vtanh.pop %v675
      %v692 = vtanh.pop %v676
      %v693 = vtanh.pop %v677
      %v694 = vtanh.pop %v678
      %v695 = vtanh.pop %v679
      %v696 = vtanh.pop %v680
      %v697 = vtanh.pop %v681
      %v698 = vtanh.pop %v682
      %v699 = vtanh.pop %v683
      %v700 = vtanh.pop %v684
      %v701 = vtanh.pop %v685
      %v702 = vtanh.pop %v686
      %v703 = vtanh.pop %v687
      %v704 = vtanh.pop %v688
      %v705 = vtanh.pop %v689
      %v707 = vlaneseq
      %v708 = vshrl.u32 %v707, 7
      %v709 = vsub.s32 0, %v708
      %v710 = vrot.slane %v583, %v709
      %v712 = vmul.f32 %v690, %v710
      %v713 = vmul.f32 %v691, %v710
      %v714 = vmul.f32 %v692, %v710
      %v715 = vmul.f32 %v693, %v710
      %v716 = vmul.f32 %v694, %v710
      %v717 = vmul.f32 %v695, %v710
      %v718 = vmul.f32 %v696, %v710
      %v719 = vmul.f32 %v697, %v710
      %v720 = vmul.f32 %v698, %v710
      %v721 = vmul.f32 %v699, %v710
      %v722 = vmul.f32 %v700, %v710
      %v723 = vmul.f32 %v701, %v710
      %v724 = vmul.f32 %v702, %v710
      %v725 = vmul.f32 %v703, %v710
      %v726 = vmul.f32 %v704, %v710
      %v727 = vmul.f32 %v705, %v710
      %v728 = vsel %vm533, %v712, 0.0
      %729 = vadd.xlane.f32.xlu0 %v728
      %v730 = vpop.xlane.xlu0 %729
      %v731 = vsel %vm533, %v713, 0.0
      %732 = vadd.xlane.f32.xlu0 %v731
      %v733 = vpop.xlane.xlu0 %732
      %v734 = vsel %vm533, %v714, 0.0
      %735 = vadd.xlane.f32.xlu0 %v734
      %v736 = vpop.xlane.xlu0 %735
      %v737 = vsel %vm533, %v715, 0.0
      %738 = vadd.xlane.f32.xlu0 %v737
      %v739 = vpop.xlane.xlu0 %738
      %v740 = vsel %vm533, %v716, 0.0
      %741 = vadd.xlane.f32.xlu0 %v740
      %v742 = vpop.xlane.xlu0 %741
      %v743 = vsel %vm533, %v717, 0.0
      %744 = vadd.xlane.f32.xlu0 %v743
      %v745 = vpop.xlane.xlu0 %744
      %v746 = vsel %vm533, %v718, 0.0
      %747 = vadd.xlane.f32.xlu0 %v746
      %v748 = vpop.xlane.xlu0 %747
      %v749 = vsel %vm533, %v719, 0.0
      %750 = vadd.xlane.f32.xlu0 %v749
      %v751 = vpop.xlane.xlu0 %750
      %v752 = vsel %vm533, %v720, 0.0
      %753 = vadd.xlane.f32.xlu0 %v752
      %v754 = vpop.xlane.xlu0 %753
      %v755 = vsel %vm533, %v721, 0.0
      %756 = vadd.xlane.f32.xlu0 %v755
      %v757 = vpop.xlane.xlu0 %756
      %v758 = vsel %vm533, %v722, 0.0
      %759 = vadd.xlane.f32.xlu0 %v758
      %v760 = vpop.xlane.xlu0 %759
      %v761 = vsel %vm533, %v723, 0.0
      %762 = vadd.xlane.f32.xlu0 %v761
      %v763 = vpop.xlane.xlu0 %762
      %v764 = vsel %vm533, %v724, 0.0
      %765 = vadd.xlane.f32.xlu0 %v764
      %v766 = vpop.xlane.xlu0 %765
      %v767 = vsel %vm533, %v725, 0.0
      %768 = vadd.xlane.f32.xlu0 %v767
      %v769 = vpop.xlane.xlu0 %768
      %v770 = vsel %vm533, %v726, 0.0
      %771 = vadd.xlane.f32.xlu0 %v770
      %v772 = vpop.xlane.xlu0 %771
      %v773 = vsel %vm533, %v727, 0.0
      %774 = vadd.xlane.f32.xlu0 %v773
      %v775 = vpop.xlane.xlu0 %774
      %v792 = vlaneseq
      %v793 = vand.u32 %v792, 127
      %v794 = vlaneseq
      %v795 = vshrl.u32 %v794, 7
      %v796 = vsub.s32 %v793, %v795
      %v797 = vrot.slane %v730, %v796
      %v798 = vadd.s32 %v793, 4294967288
      %v799 = vlaneseq
      %v800 = vshrl.u32 %v799, 7
      %v801 = vsub.s32 %v798, %v800
      %v802 = vrot.slane %v733, %v801
      %vm803 = vcmask 130112
      %v804 = vsel %vm803, %v802, %v797
      %v805 = vlaneseq
      %v806 = vshrl.u32 %v805, 7
      %v807 = vsub.s32 %v793, %v806
      %v808 = vrot.slane %v736, %v807
      %v809 = vlaneseq
      %v810 = vshrl.u32 %v809, 7
      %v811 = vsub.s32 %v798, %v810
      %v812 = vrot.slane %v739, %v811
      %v813 = vsel %vm803, %v812, %v808
      %v814 = vlaneseq
      %v815 = vshrl.u32 %v814, 7
      %v816 = vsub.s32 %v793, %v815
      %v817 = vrot.slane %v742, %v816
      %v818 = vlaneseq
      %v819 = vshrl.u32 %v818, 7
      %v820 = vsub.s32 %v798, %v819
      %v821 = vrot.slane %v745, %v820
      %v822 = vsel %vm803, %v821, %v817
      %v823 = vlaneseq
      %v824 = vshrl.u32 %v823, 7
      %v825 = vsub.s32 %v793, %v824
      %v826 = vrot.slane %v748, %v825
      %v827 = vlaneseq
      %v828 = vshrl.u32 %v827, 7
      %v829 = vsub.s32 %v798, %v828
      %v830 = vrot.slane %v751, %v829
      %v831 = vsel %vm803, %v830, %v826
      %v832 = vlaneseq
      %v833 = vshrl.u32 %v832, 7
      %v834 = vsub.s32 %v793, %v833
      %v835 = vrot.slane %v754, %v834
      %v836 = vlaneseq
      %v837 = vshrl.u32 %v836, 7
      %v838 = vsub.s32 %v798, %v837
      %v839 = vrot.slane %v757, %v838
      %v840 = vsel %vm803, %v839, %v835
      %v841 = vlaneseq
      %v842 = vshrl.u32 %v841, 7
      %v843 = vsub.s32 %v793, %v842
      %v844 = vrot.slane %v760, %v843
      %v845 = vlaneseq
      %v846 = vshrl.u32 %v845, 7
      %v847 = vsub.s32 %v798, %v846
      %v848 = vrot.slane %v763, %v847
      %v849 = vsel %vm803, %v848, %v844
      %v850 = vlaneseq
      %v851 = vshrl.u32 %v850, 7
      %v852 = vsub.s32 %v793, %v851
      %v853 = vrot.slane %v766, %v852
      %v854 = vlaneseq
      %v855 = vshrl.u32 %v854, 7
      %v856 = vsub.s32 %v798, %v855
      %v857 = vrot.slane %v769, %v856
      %v858 = vsel %vm803, %v857, %v853
      %v859 = vlaneseq
      %v860 = vshrl.u32 %v859, 7
      %v861 = vsub.s32 %v793, %v860
      %v862 = vrot.slane %v772, %v861
      %v863 = vlaneseq
      %v864 = vshrl.u32 %v863, 7
      %v865 = vsub.s32 %v798, %v864
      %v866 = vrot.slane %v775, %v865
      %v867 = vsel %vm803, %v866, %v862
      %vm868 = vcmask 1041409
      %v869 = vsel %vm868, %v813, %v804
      %vm870 = vcmask 1042434
      %v871 = vsel %vm870, %v822, %v869
      %vm872 = vcmask 1043459
      %v873 = vsel %vm872, %v831, %v871
      %vm874 = vcmask 1044484
      %v875 = vsel %vm874, %v840, %v873
      %vm876 = vcmask 1045509
      %v877 = vsel %vm876, %v849, %v875
      %vm878 = vcmask 1046534
      %v879 = vsel %vm878, %v858, %v877
      %vm880 = vcmask 1047559
      %v881 = vsel %vm880, %v867, %v879
      %vm883 = vcmask 130048
      %884 = vst.msk [vmem:[%s428] sm:$0xff] %vm883, %v881
      %p885 = scmp.lt.s32.totalorder %s23, 3
      %s886 = scalar_select %p885, %s23, 3
      %p887 = scmp.lt.s32.totalorder %s24, 1
      %s888 = scalar_select %p887, %s24, 1
      %p889 = scmp.lt.s32.totalorder %s25, 0
      %s890 = scalar_select %p889, %s25, 0
      %s891 = sadd.s32 %s890, %s888
      %s892 = smul.addr %s886, 2
      %s893 = sadd.s32 %s891, %s892
      %s894 = smul.addr %s893, 8
      %s895 = scalar_lea.vmem %s7, %s894
      // Predicated region
      $region53: #{set_decoder_forward.7} parent=47 // pred_check
        %p896 = pneg %p243
      $region54: #{set_decoder_forward.7} parent=47 // pred_check_branch
        %898 = sbr.rel (%p896) target = $region56
      $region55: #{set_decoder_forward.7} parent=47 // pred_region
        _
      $region56: #{set_decoder_forward.7} parent=47 // pred_fallthru
        _
    $region48: #{set_decoder_forward.7} parent=5 // pred_fallthru
      _
    %p899 = scmp.le.s32.totalorder 2, %s13
    // Predicated region
    $region57: #{set_decoder_forward.7} parent=5 // pred_check
      %p900 = pneg %p899
    $region58: #{set_decoder_forward.7} parent=5 // pred_check_branch
      %902 = sbr.rel (%p900) target = $region60
    $region59: #{set_decoder_forward.7} parent=5 // pred_region
      %s903 = ssub.s32 %s13, 2
      // Predicated region
      $region61: #{set_decoder_forward.7} parent=59 // pred_check
        %p904 = pneg %p249
      $region62: #{set_decoder_forward.7} parent=59 // pred_check_branch
        %906 = sbr.rel (%p904) target = $region64
      $region63: #{set_decoder_forward.7} parent=59 // pred_region
        %p907 = scmp.lt.s32.totalorder %s26, 3
        %s908 = scalar_select %p907, %s26, 3
        %p909 = scmp.lt.s32.totalorder %s27, 1
        %s910 = scalar_select %p909, %s27, 1
        %p911 = scmp.lt.s32.totalorder %s28, 0
        %s912 = scalar_select %p911, %s28, 0
        %s913 = sadd.s32 %s912, %s910
        %s914 = smul.addr %s908, 2
        %s915 = sadd.s32 %s913, %s914
        %s916 = smul.addr %s915, 8
        %s917 = scalar_lea.vmem %s7, %s916
      $region64: #{set_decoder_forward.7} parent=59 // pred_fallthru
        _
    $region60: #{set_decoder_forward.7} parent=5 // pred_fallthru
      _
  $region6: #{set_decoder_forward.7} parent=0 // loop_footer
    %s17 = sadd.s32 1, %s13
  $region7: #{set_decoder_forward.7} parent=0 // loop_footer_branch
    %12 = sbr.rel target = $region3
  $region8: #{set_decoder_forward.7} parent=0 // loop_exit
    _

</llo_original>
